<compile_context>
chip_gen: v6e
topology: v6e:2x2x1
jax: 0.10.0
libtpu: 0.0.40
codegen_flags: <defaults>
</compile_context>

<pallas_src>
import jax
import jax.numpy as jnp
from jax.experimental import pallas as pl
from jax.experimental.pallas import tpu as pltpu

HID1, HID2 = 400, 300
H1_PAD, H2_PAD = 512, 384          # hidden dims padded to multiples of 128
MAX_TILE_B = 2048                  # per-step footprint ~15 MiB; fits all chips


def _round_up(x, m):
    return -(-x // m) * m


def _choose_tiling(B):
    """Pick (tile_rows, num_tiles) for the batch axis.

    - tb is a multiple of 128 (full MXU M occupancy, native bf16 tiling)
    - num_tiles = cdiv(B, MAX_TILE_B), but >= 2 whenever B > 128 so the
      'parallel' axis keeps both v7x TensorCores busy
    - padding waste is < 128 rows per tile
    """
    num_tiles = max(-(-B // MAX_TILE_B), 1)
    if num_tiles < 2 and B > 128:
        num_tiles = 2
    tb = _round_up(-(-B // num_tiles), 128)
    return tb, num_tiles


def critic_kernel(x_ref, w1_ref, b1_ref, w2_ref, b2_ref, w3_ref, b3_ref, out_ref):
    # fc1: bf16 MXU matmul, f32 accumulate, f32 bias + ReLU
    h1 = jnp.dot(x_ref[...], w1_ref[...], preferred_element_type=jnp.float32)
    h1 = jnp.maximum(h1 + b1_ref[...], 0.0)

    # fc2
    h2 = jnp.dot(h1.astype(jnp.bfloat16), w2_ref[...],
                 preferred_element_type=jnp.float32)
    h2 = jnp.maximum(h2 + b2_ref[...], 0.0)

    # fc3 (N=1): VPU multiply + lane reduction, keeps the MXU slot free
    q = jnp.sum(h2 * w3_ref[...], axis=-1, keepdims=True) + b3_ref[0, 0]

    # narrow (tb, 1) store: output HBM traffic is 4 B/row instead of 512 B/row
    out_ref[...] = q


def prepare_params(params):
    """One-time prep: transpose to (in, out), zero-pad hidden dims, cast MXU
    operands to bf16. Padded bias entries are zero -> padded lanes stay zero."""
    w1, b1 = params["w1"], params["b1"]
    w2, b2 = params["w2"], params["b2"]
    w3, b3 = params["w3"], params["b3"]
    w1_p = jnp.pad(w1.T, ((0, 0), (0, H1_PAD - HID1))).astype(jnp.bfloat16)
    b1_p = jnp.pad(b1, (0, H1_PAD - HID1)).reshape(1, -1).astype(jnp.float32)
    w2_p = jnp.pad(w2.T, ((0, H1_PAD - HID1), (0, H2_PAD - HID2))).astype(jnp.bfloat16)
    b2_p = jnp.pad(b2, (0, H2_PAD - HID2)).reshape(1, -1).astype(jnp.float32)
    w3_p = jnp.pad(w3, ((0, 0), (0, H2_PAD - HID2))).astype(jnp.float32)  # (1, 384)
    b3_p = b3.reshape(1, 1).astype(jnp.float32)
    return {"w1": w1_p, "b1": b1_p, "w2": w2_p, "b2": b2_p, "w3": w3_p, "b3": b3_p}


@jax.jit
def critic_forward(obs, action, prepped):
    """obs: [B, state_dim] f32, action: [B, action_dim] f32 -> [B, 1] f32."""
    B = obs.shape[0]

    # concat in the wrapper; cast activations to bf16 for the MXU
    x = jnp.concatenate([obs, action], axis=1).astype(jnp.bfloat16)
    d_in = x.shape[1]

    tb, num_tiles = _choose_tiling(B)
    b_pad = tb * num_tiles
    if b_pad != B:
        x = jnp.pad(x, ((0, b_pad - B), (0, 0)))

    const = lambda i: (0, 0)

    flops = 2 * b_pad * (d_in * H1_PAD + H1_PAD * H2_PAD + H2_PAD)
    bytes_accessed = (
        x.size * x.dtype.itemsize
        + sum(int(v.size) * v.dtype.itemsize for v in prepped.values())
        + b_pad * 4
    )

    out = pl.pallas_call(
        critic_kernel,
        out_shape=jax.ShapeDtypeStruct((b_pad, 1), jnp.float32),
        grid=(num_tiles,),
        in_specs=[
            pl.BlockSpec((tb, d_in), lambda i: (i, 0)),         # x tile
            pl.BlockSpec((d_in, H1_PAD), const),                # W1 (resident)
            pl.BlockSpec((1, H1_PAD), const),                   # b1
            pl.BlockSpec((H1_PAD, H2_PAD), const),              # W2 (resident)
            pl.BlockSpec((1, H2_PAD), const),                   # b2
            pl.BlockSpec((1, H2_PAD), const),                   # w3 row
            pl.BlockSpec(memory_space=pltpu.MemorySpace.SMEM),  # b3 scalar
        ],
        out_specs=pl.BlockSpec((tb, 1), lambda i: (i, 0)),
        compiler_params=pltpu.CompilerParams(
            dimension_semantics=("parallel",),
            vmem_limit_bytes=48 * 1024 * 1024,
        ),
        cost_estimate=pl.CostEstimate(
            flops=flops, transcendentals=0, bytes_accessed=bytes_accessed),
    )(x, prepped["w1"], prepped["b1"], prepped["w2"], prepped["b2"],
      prepped["w3"], prepped["b3"])

    return out[:B, :]


def init_params(key, state_dim, action_dim):
    """Deterministic synthetic init matching nn.Linear shapes (out, in)."""
    in1 = state_dim + action_dim
    ks = jax.random.split(key, 6)

    def uniform(k, shape, fan_in):
        bound = 1.0 / jnp.sqrt(jnp.float32(fan_in))
        return jax.random.uniform(k, shape, jnp.float32, -bound, bound)

    return {
        "w1": uniform(ks[0], (HID1, in1), in1),
        "b1": uniform(ks[1], (HID1,), in1),
        "w2": uniform(ks[2], (HID2, HID1), HID1),
        "b2": uniform(ks[3], (HID2,), HID1),
        "w3": uniform(ks[4], (1, HID2), HID2),
        "b3": uniform(ks[5], (1,), HID2),
    }


def reference_forward(obs, action, params):
    x = jnp.concatenate([obs, action], axis=1)
    x = jax.nn.relu(x @ params["w1"].T + params["b1"])
    x = jax.nn.relu(x @ params["w2"].T + params["b2"])
    return x @ params["w3"].T + params["b3"]


if __name__ == "__main__":
    key = jax.random.PRNGKey(0)
    k_obs, k_act, k_params = jax.random.split(key, 3)

    batch, state_dim, action_dim = 8, 16, 8
    obs = jax.random.normal(k_obs, (batch, state_dim), jnp.float32)
    action = jax.random.normal(k_act, (batch, action_dim), jnp.float32)

    params = init_params(k_params, state_dim, action_dim)
    prepped = prepare_params(params)          # hoisted one-time weight prep

    out = critic_forward(obs, action, prepped)
    out = jax.block_until_ready(out)

    ref = reference_forward(obs, action, params)   # full-f32 reference
    assert out.shape == (batch, 1)
    # bf16 MXU operands w/ f32 accumulation -> loosened tolerance vs f32 ref
    assert jnp.allclose(out, ref, atol=5e-2, rtol=5e-2), (out, ref)

    print("KERNEL_OK")
</pallas_src>

<mosaic_0001>
module attributes {stable_mosaic.version = 11 : i64} {
  func.func @critic_kernel(%arg0: i32, %arg1: memref<128x24xbf16, #tpu.memory_space<vmem>>, %arg2: memref<24x512xbf16, #tpu.memory_space<vmem>>, %arg3: memref<1x512xf32, #tpu.memory_space<vmem>>, %arg4: memref<512x384xbf16, #tpu.memory_space<vmem>>, %arg5: memref<1x384xf32, #tpu.memory_space<vmem>>, %arg6: memref<1x384xf32, #tpu.memory_space<vmem>>, %arg7: memref<1x1xf32, #tpu.memory_space<smem>>, %arg8: memref<128x1xf32, #tpu.memory_space<vmem>>) attributes {dimension_semantics = [#tpu.dimension_semantics<parallel>], iteration_bounds = array<i64: 1>, scalar_prefetch = 0 : i64, scratch_operands = 0 : i64, tpu.core_type = #tpu.core_type<tc>, window_params = [{transform_indices = @transform_0, window_bounds = array<i64: 128, 24>}, {pipeline_mode = #tpu.pipeline_mode<synchronous>, transform_indices = @transform_1, window_bounds = array<i64: 24, 512>}, {pipeline_mode = #tpu.pipeline_mode<synchronous>, transform_indices = @transform_2, window_bounds = array<i64: 1, 512>}, {pipeline_mode = #tpu.pipeline_mode<synchronous>, transform_indices = @transform_3, window_bounds = array<i64: 512, 384>}, {pipeline_mode = #tpu.pipeline_mode<synchronous>, transform_indices = @transform_4, window_bounds = array<i64: 1, 384>}, {pipeline_mode = #tpu.pipeline_mode<synchronous>, transform_indices = @transform_5, window_bounds = array<i64: 1, 384>}, {transform_indices = @transform_6, window_bounds = array<i64: 1, 1>}, {transform_indices = @transform_7, window_bounds = array<i64: 128, 1>}]} {
    %c0 = arith.constant 0 : index
    %c0_0 = arith.constant 0 : index
    %0 = vector.load %arg1[%c0, %c0_0] : memref<128x24xbf16, #tpu.memory_space<vmem>>, vector<128x24xbf16>
    %c0_1 = arith.constant 0 : index
    %c0_2 = arith.constant 0 : index
    %1 = vector.load %arg2[%c0_1, %c0_2] : memref<24x512xbf16, #tpu.memory_space<vmem>>, vector<24x512xbf16>
    %cst = arith.constant dense<0.000000e+00> : vector<128x512xf32>
    %2 = tpu.matmul %0, %1, %cst {dimension_numbers = #tpu.dot_dimension_numbers<[1], [0], [0], [1], [0, 0, 1, 1], [], []>} : vector<128x24xbf16>, vector<24x512xbf16>, vector<128x512xf32> -> vector<128x512xf32>
    %c0_3 = arith.constant 0 : index
    %c0_4 = arith.constant 0 : index
    %3 = vector.load %arg3[%c0_3, %c0_4] : memref<1x512xf32, #tpu.memory_space<vmem>>, vector<1x512xf32>
    %4 = vector.broadcast %3 : vector<1x512xf32> to vector<128x512xf32>
    %5 = arith.addf %2, %4 : vector<128x512xf32>
    %cst_5 = arith.constant 0.000000e+00 : f32
    %6 = vector.broadcast %cst_5 : f32 to vector<128x512xf32>
    %7 = arith.maximumf %5, %6 : vector<128x512xf32>
    %8 = arith.truncf %7 : vector<128x512xf32> to vector<128x512xbf16>
    %c0_6 = arith.constant 0 : index
    %c0_7 = arith.constant 0 : index
    %9 = vector.load %arg4[%c0_6, %c0_7] : memref<512x384xbf16, #tpu.memory_space<vmem>>, vector<512x384xbf16>
    %cst_8 = arith.constant dense<0.000000e+00> : vector<128x384xf32>
    %10 = tpu.matmul %8, %9, %cst_8 {dimension_numbers = #tpu.dot_dimension_numbers<[1], [0], [0], [1], [0, 0, 1, 1], [], []>} : vector<128x512xbf16>, vector<512x384xbf16>, vector<128x384xf32> -> vector<128x384xf32>
    %c0_9 = arith.constant 0 : index
    %c0_10 = arith.constant 0 : index
    %11 = vector.load %arg5[%c0_9, %c0_10] : memref<1x384xf32, #tpu.memory_space<vmem>>, vector<1x384xf32>
    %12 = vector.broadcast %11 : vector<1x384xf32> to vector<128x384xf32>
    %13 = arith.addf %10, %12 : vector<128x384xf32>
    %cst_11 = arith.constant 0.000000e+00 : f32
    %14 = vector.broadcast %cst_11 : f32 to vector<128x384xf32>
    %15 = arith.maximumf %13, %14 : vector<128x384xf32>
    %c0_12 = arith.constant 0 : index
    %c0_13 = arith.constant 0 : index
    %16 = vector.load %arg6[%c0_12, %c0_13] : memref<1x384xf32, #tpu.memory_space<vmem>>, vector<1x384xf32>
    %17 = vector.broadcast %16 : vector<1x384xf32> to vector<128x384xf32>
    %18 = arith.mulf %15, %17 : vector<128x384xf32>
    %cst_14 = arith.constant dense<0.000000e+00> : vector<128xf32>
    %19 = vector.multi_reduction <add>, %18, %cst_14 [1] : vector<128x384xf32> to vector<128xf32>
    %20 = vector.shape_cast %19 : vector<128xf32> to vector<128x1xf32>
    %c0_15 = arith.constant 0 : index
    %c0_16 = arith.constant 0 : index
    %21 = memref.load %arg7[%c0_15, %c0_16] : memref<1x1xf32, #tpu.memory_space<smem>>
    %22 = vector.broadcast %21 : f32 to vector<128x1xf32>
    %23 = arith.addf %20, %22 : vector<128x1xf32>
    %c0_17 = arith.constant 0 : index
    %c0_18 = arith.constant 0 : index
    %24 = vector.load %arg8[%c0_17, %c0_18] : memref<128x1xf32, #tpu.memory_space<vmem>>, vector<128x1xf32>
    tpu.vector_store %arg8[%c0_17, %c0_18], %23 {strides = array<i32>} : memref<128x1xf32, #tpu.memory_space<vmem>>, vector<128x1xf32>,
    return
  }
  func.func @transform_0(%arg0: i32) -> (i32, i32) {
    %c0_i32 = arith.constant 0 : i32
    %c0_i32_0 = arith.constant 0 : i32
    return %arg0, %c0_i32 : i32, i32
  }
  func.func @transform_1(%arg0: i32) -> (i32, i32) {
    %c0_i32 = arith.constant 0 : i32
    %c0_i32_0 = arith.constant 0 : i32
    %c0_i32_1 = arith.constant 0 : i32
    return %c0_i32, %c0_i32_0 : i32, i32
  }
  func.func @transform_2(%arg0: i32) -> (i32, i32) {
    %c0_i32 = arith.constant 0 : i32
    %c0_i32_0 = arith.constant 0 : i32
    %c0_i32_1 = arith.constant 0 : i32
    return %c0_i32, %c0_i32_0 : i32, i32
  }
  func.func @transform_3(%arg0: i32) -> (i32, i32) {
    %c0_i32 = arith.constant 0 : i32
    %c0_i32_0 = arith.constant 0 : i32
    %c0_i32_1 = arith.constant 0 : i32
    return %c0_i32, %c0_i32_0 : i32, i32
  }
  func.func @transform_4(%arg0: i32) -> (i32, i32) {
    %c0_i32 = arith.constant 0 : i32
    %c0_i32_0 = arith.constant 0 : i32
    %c0_i32_1 = arith.constant 0 : i32
    return %c0_i32, %c0_i32_0 : i32, i32
  }
  func.func @transform_5(%arg0: i32) -> (i32, i32) {
    %c0_i32 = arith.constant 0 : i32
    %c0_i32_0 = arith.constant 0 : i32
    %c0_i32_1 = arith.constant 0 : i32
    return %c0_i32, %c0_i32_0 : i32, i32
  }
  func.func @transform_6(%arg0: i32) -> (i32, i32) {
    %c0_i32 = arith.constant 0 : i32
    %c0_i32_0 = arith.constant 0 : i32
    %c0_i32_1 = arith.constant 0 : i32
    return %c0_i32, %c0_i32_0 : i32, i32
  }
  func.func @transform_7(%arg0: i32) -> (i32, i32) {
    %c0_i32 = arith.constant 0 : i32
    %c0_i32_0 = arith.constant 0 : i32
    return %arg0, %c0_i32 : i32, i32
  }
}

</mosaic_0001>

<llo_original>
// kernel: critic_forward.1
$region0: #{critic_forward.1}
  #allocation0 [shape = 'u32[]', space=smem, size = 0x4, offset = 0x4, fixed_abs, tag = 'smem constant byte address 0x4 - core index']
  #allocation1 [shape = 'u32[144,128]{1,0:T(1,128)}', space=vmem, size = 0x12000, scoped, tag = 'internal scratch']
  #allocation2 [shape = 'f32[1,1]{1,0:T(1,128)S(6)}', space=smem, size = 0x200, scoped, tag = 'scoped memory for critic_forward.1']
  %s0 = inlined_call_operand.vmem [shape: bf16[128,24], index: 0, kind: input, shape index: {}]
  %s1 = inlined_call_operand.vmem [shape: bf16[24,512], index: 1, kind: input, shape index: {}]
  %s2 = inlined_call_operand.vmem [shape: f32[1,512], index: 2, kind: input, shape index: {}]
  %s3 = inlined_call_operand.hbm [shape: bf16[512,384], index: 3, kind: input, shape index: {}]
  %s4 = inlined_call_operand.vmem [shape: f32[1,384], index: 4, kind: input, shape index: {}]
  %s5 = inlined_call_operand.vmem [shape: f32[1,384], index: 5, kind: input, shape index: {}]
  %s6 = inlined_call_operand.<no memory space> [shape: f32[1,1], index: 6, kind: input, shape index: {}]
  %s7 = inlined_call_operand.vmem [shape: f32[128,1], index: 7, kind: output, shape index: {}]
  %s8 = sld [smem:[#allocation0]]
  $region42: #{critic_forward.1} parent=0
    _
  %s10 = ssub.s32 1, %s8
  %s11 = scalar_select 0, %s10, %s8
  %12 = sst [smem:[#allocation2]] %s6
  $region1: #{critic_forward.1} parent=0
    #allocation3 [shape = 'u8[393216]{0}', space=vmem, size = 0x60000, scoped, tag = 'input window, operand 3, single buffered']
    #allocation4 [shape = 's32[1]{0}', space=sflag, size = 0x4, scoped, tag = 'scoped memory for critic_forward.1']
    %13 = vsyncpa [#allocation4], 0
    // Predicated region
    $region2: #{critic_forward.1} parent=1 // pred_check
      _
    $region3: #{critic_forward.1} parent=1 // pred_check_branch
      %15 = sbr.rel (0) target = $region5
    $region4: #{critic_forward.1} parent=1 // pred_region
      _
    $region5: #{critic_forward.1} parent=1 // pred_fallthru
      _
    // Predicated region
    $region6: #{critic_forward.1} parent=1 // pred_check
      _
    $region7: #{critic_forward.1} parent=1 // pred_check_branch
      %17 = sbr.rel (0) target = $region9
    $region8: #{critic_forward.1} parent=1 // pred_region
      _
    $region9: #{critic_forward.1} parent=1 // pred_fallthru
      _
    // Predicated region
    $region10: #{critic_forward.1} parent=1 // pred_check
      _
    $region11: #{critic_forward.1} parent=1 // pred_check_branch
      %19 = sbr.rel (0) target = $region13
    $region12: #{critic_forward.1} parent=1 // pred_region
      _
    $region13: #{critic_forward.1} parent=1 // pred_fallthru
      _
    // Predicated region
    $region14: #{critic_forward.1} parent=1 // pred_check
      _
    $region15: #{critic_forward.1} parent=1 // pred_check_branch
      %21 = sbr.rel (0) target = $region17
    $region16: #{critic_forward.1} parent=1 // pred_region
      %s23 = ssub.s32 12288, 12288
      %24 = vsyncadd [#allocation4], %s23
      %s25 = sshll.u32 [#allocation3], 4
      %s26 = int_to_ptr.vmem [resolvable:$true] %s25
      %31 = dma.hbm_to_vmem [thread:$0]  %s3, 12288, %s26, [#allocation4], 192, 192, 12
    $region17: #{critic_forward.1} parent=1 // pred_fallthru
      _
    // Predicated region
    $region18: #{critic_forward.1} parent=1 // pred_check
      _
    $region19: #{critic_forward.1} parent=1 // pred_check_branch
      %33 = sbr.rel (0) target = $region21
    $region20: #{critic_forward.1} parent=1 // pred_region
      _
    $region21: #{critic_forward.1} parent=1 // pred_fallthru
      _
    // Predicated region
    $region22: #{critic_forward.1} parent=1 // pred_check
      _
    $region23: #{critic_forward.1} parent=1 // pred_check_branch
      %35 = sbr.rel (0) target = $region25
    $region24: #{critic_forward.1} parent=1 // pred_region
      _
    $region25: #{critic_forward.1} parent=1 // pred_fallthru
      _
    // Predicated region
    $region26: #{critic_forward.1} parent=1 // pred_check
      _
    $region27: #{critic_forward.1} parent=1 // pred_check_branch
      %37 = sbr.rel (0) target = $region29
    $region28: #{critic_forward.1} parent=1 // pred_region
      _
    $region29: #{critic_forward.1} parent=1 // pred_fallthru
      _
    // Predicated region
    $region30: #{critic_forward.1} parent=1 // pred_check
      _
    $region31: #{critic_forward.1} parent=1 // pred_check_branch
      %39 = sbr.rel (0) target = $region33
    $region32: #{critic_forward.1} parent=1 // pred_region
      %40 = dma.done [#allocation4], 12288
    $region33: #{critic_forward.1} parent=1 // pred_fallthru
      _
    %v42 = vld [vmem:[%s0] sm:$0xf]
    %v43 = vld [vmem:[%s0 + $0x4] sm:$0xf]
    %v44 = vld [vmem:[%s0 + $0x8] sm:$0xf]
    %v45 = vld [vmem:[%s0 + $0xc] sm:$0xf]
    %v46 = vld [vmem:[%s0 + $0x10] sm:$0xf]
    %v47 = vld [vmem:[%s0 + $0x14] sm:$0xf]
    %v48 = vld [vmem:[%s0 + $0x18] sm:$0xf]
    %v49 = vld [vmem:[%s0 + $0x1c] sm:$0xf]
    %v50 = vld [vmem:[%s0 + $0x20] sm:$0xf]
    %v51 = vld [vmem:[%s0 + $0x24] sm:$0xf]
    %v52 = vld [vmem:[%s0 + $0x28] sm:$0xf]
    %v53 = vld [vmem:[%s0 + $0x2c] sm:$0xf]
    %v54 = vld [vmem:[%s0 + $0x30] sm:$0xf]
    %v55 = vld [vmem:[%s0 + $0x34] sm:$0xf]
    %v56 = vld [vmem:[%s0 + $0x38] sm:$0xf]
    %v57 = vld [vmem:[%s0 + $0x3c] sm:$0xf]
    %v58 = vld [vmem:[%s1] sm:$0xff]
    %v59 = vld [vmem:[%s1 + $0x8] sm:$0xff]
    %v60 = vld [vmem:[%s1 + $0x10] sm:$0xff]
    %v61 = vld [vmem:[%s1 + $0x18] sm:$0xff]
    %v62 = vld [vmem:[%s1 + $0x20] sm:$0xff]
    %v63 = vld [vmem:[%s1 + $0x28] sm:$0xff]
    %v64 = vld [vmem:[%s2] sm:$0xf]
    %v66 = vlaneseq
    %v67 = vshrl.u32 %v66, 7
    %v68 = vsub.s32 0, %v67
    %v69 = vrot.slane %v64, %v68
    %v70 = vlaneseq
    %v71 = vshrl.u32 %v70, 7
    %v72 = vsub.s32 1, %v71
    %v73 = vrot.slane %v64, %v72
    %v74 = vlaneseq
    %v75 = vshrl.u32 %v74, 7
    %v76 = vsub.s32 2, %v75
    %v77 = vrot.slane %v64, %v76
    %v78 = vlaneseq
    %v79 = vshrl.u32 %v78, 7
    %v80 = vsub.s32 3, %v79
    %v81 = vrot.slane %v64, %v80
    %v102 = vunpack.c.l.b16 %v42
    %v103 = vunpack.c.l.b16 %v43
    %v104 = vunpack.c.l.b16 %v44
    %v105 = vunpack.c.l.b16 %v45
    %v106 = vunpack.c.l.b16 %v46
    %v107 = vunpack.c.l.b16 %v47
    %v108 = vunpack.c.l.b16 %v48
    %v109 = vunpack.c.l.b16 %v49
    %v110 = vunpack.c.l.b16 %v50
    %v111 = vunpack.c.l.b16 %v51
    %v112 = vunpack.c.l.b16 %v52
    %v113 = vunpack.c.l.b16 %v53
    %v114 = vunpack.c.l.b16 %v54
    %v115 = vunpack.c.l.b16 %v55
    %v116 = vunpack.c.l.b16 %v56
    %v117 = vunpack.c.l.b16 %v57
    %v118 = vpack.c.b16 %v103, %v102
    %v119 = vpack.c.b16 %v105, %v104
    %v120 = vpack.c.b16 %v107, %v106
    %v121 = vpack.c.b16 %v109, %v108
    %v122 = vpack.c.b16 %v111, %v110
    %v123 = vpack.c.b16 %v113, %v112
    %v124 = vpack.c.b16 %v115, %v114
    %v125 = vpack.c.b16 %v117, %v116
    %v132 = vunpack.c.l.b16 %v58
    %v133 = vunpack.c.h.b16 %v58
    %v134 = vunpack.c.l.b16 %v59
    %v135 = vunpack.c.h.b16 %v59
    %v136 = vunpack.c.l.b16 %v60
    %v137 = vunpack.c.h.b16 %v60
    %v138 = vunpack.c.l.b16 %v61
    %v139 = vunpack.c.h.b16 %v61
    %v140 = vunpack.c.l.b16 %v62
    %v141 = vunpack.c.h.b16 %v62
    %v142 = vunpack.c.l.b16 %v63
    %v143 = vunpack.c.h.b16 %v63
    %v144 = vpack.c.b16 %v136, %v132
    %v145 = vpack.c.b16 %v137, %v133
    %v146 = vpack.c.b16 %v138, %v134
    %v147 = vpack.c.b16 %v139, %v135
    %v148 = vpack.c.b16 %v140, %v140
    %v149 = vpack.c.b16 %v141, %v141
    %v150 = vpack.c.b16 %v142, %v142
    %v151 = vpack.c.b16 %v143, %v143
    %vm156 = vcmask 195584
    %v158 = vsel %vm156, %v118, 0
    %v161 = vsel %vm156, %v119, 0
    %v164 = vsel %vm156, %v120, 0
    %v167 = vsel %vm156, %v121, 0
    %v170 = vsel %vm156, %v122, 0
    %v173 = vsel %vm156, %v123, 0
    %v176 = vsel %vm156, %v124, 0
    %v179 = vsel %vm156, %v125, 0
    %vm181 = vcmask 1043456
    %v183 = vsel %vm181, %v148, 0
    %v186 = vsel %vm181, %v149, 0
    %v189 = vsel %vm181, %v150, 0
    %v192 = vsel %vm181, %v151, 0
    %194 = vmatprep.subr.bf16.mxu0 0
    %195 = vmatpush1.bf16.msra.mxu0 0
    %196 = vmatprep.subr.bf16.mxu0 0
    %197 = vmatpush1.bf16.msra.mxu0 0
    %198 = vmatprep.subr.bf16.mxu0 0
    %199 = vmatpush1.bf16.msra.mxu0 0
    %200 = vmatprep.subr.bf16.mxu0 0
    %201 = vmatpush1.bf16.msra.mxu0 0
    %202 = vmatprep.subr.bf16.mxu0 0
    %203 = vmatpush1.bf16.msra.mxu0 0
    %204 = vmatprep.subr.bf16.mxu0 0
    %205 = vmatpush1.bf16.msra.mxu0 0
    %206 = vmatprep.subr.bf16.mxu0 %v186
    %207 = vmatpush1.bf16.msra.mxu0 %v183
    %208 = vmatprep.subr.bf16.mxu0 %v145
    %209 = vmatpush1.bf16.msra.mxu0 %v144
    %210 = vmatprep.subr.bf16.mxu0 0
    %211 = vmatpush2.bf16.msra.mxu0 0
    %212 = vmatprep.subr.bf16.mxu0 0
    %213 = vmatpush2.bf16.msra.mxu0 0
    %214 = vmatprep.subr.bf16.mxu0 0
    %215 = vmatpush2.bf16.msra.mxu0 0
    %216 = vmatprep.subr.bf16.mxu0 0
    %217 = vmatpush2.bf16.msra.mxu0 0
    %218 = vmatprep.subr.bf16.mxu0 0
    %219 = vmatpush2.bf16.msra.mxu0 0
    %220 = vmatprep.subr.bf16.mxu0 0
    %221 = vmatpush2.bf16.msra.mxu0 0
    %222 = vmatprep.subr.bf16.mxu0 0
    %223 = vmatpush2.bf16.msra.mxu0 0
    %224 = vmatprep.subr.bf16.mxu0 0
    %225 = vmatpush2.bf16.msra.mxu0 0
    %226 = vmatprep.mubr.bf16.mxu0 0
    %227 = vmatmul.mubr.bf16.gmra.mxu0 %v158
    %v228 = vpop.f32.mrf.mxu0
    %v229 = vadd.f32 %v69, %v228
    %v230 = vpop.f32.mrf.mxu0
    %v231 = vadd.f32 %v73, %v230
    %v232 = vpop.f32.mrf.mxu0
    %v233 = vadd.f32 %v69, %v232
    %v234 = vpop.f32.mrf.mxu0
    %v235 = vadd.f32 %v73, %v234
    %236 = vmatprep.mubr.bf16.mxu0 0
    %237 = vmatmul.mubr.bf16.gmra.mxu0 %v161
    %v238 = vpop.f32.mrf.mxu0
    %v239 = vadd.f32 %v69, %v238
    %v240 = vpop.f32.mrf.mxu0
    %v241 = vadd.f32 %v73, %v240
    %v242 = vpop.f32.mrf.mxu0
    %v243 = vadd.f32 %v69, %v242
    %v244 = vpop.f32.mrf.mxu0
    %v245 = vadd.f32 %v73, %v244
    %246 = vmatprep.mubr.bf16.mxu0 0
    %247 = vmatmul.mubr.bf16.gmra.mxu0 %v164
    %v248 = vpop.f32.mrf.mxu0
    %v249 = vadd.f32 %v69, %v248
    %v250 = vpop.f32.mrf.mxu0
    %v251 = vadd.f32 %v73, %v250
    %v252 = vpop.f32.mrf.mxu0
    %v253 = vadd.f32 %v69, %v252
    %v254 = vpop.f32.mrf.mxu0
    %v255 = vadd.f32 %v73, %v254
    %256 = vmatprep.mubr.bf16.mxu0 0
    %257 = vmatmul.mubr.bf16.gmra.mxu0 %v167
    %v258 = vpop.f32.mrf.mxu0
    %v259 = vadd.f32 %v69, %v258
    %v260 = vpop.f32.mrf.mxu0
    %v261 = vadd.f32 %v73, %v260
    %v262 = vpop.f32.mrf.mxu0
    %v263 = vadd.f32 %v69, %v262
    %v264 = vpop.f32.mrf.mxu0
    %v265 = vadd.f32 %v73, %v264
    %266 = vmatprep.mubr.bf16.mxu0 0
    %267 = vmatmul.mubr.bf16.gmra.mxu0 %v170
    %v268 = vpop.f32.mrf.mxu0
    %v269 = vadd.f32 %v69, %v268
    %v270 = vpop.f32.mrf.mxu0
    %v271 = vadd.f32 %v73, %v270
    %v272 = vpop.f32.mrf.mxu0
    %v273 = vadd.f32 %v69, %v272
    %v274 = vpop.f32.mrf.mxu0
    %v275 = vadd.f32 %v73, %v274
    %276 = vmatprep.mubr.bf16.mxu0 0
    %277 = vmatmul.mubr.bf16.gmra.mxu0 %v173
    %v278 = vpop.f32.mrf.mxu0
    %v279 = vadd.f32 %v69, %v278
    %v280 = vpop.f32.mrf.mxu0
    %v281 = vadd.f32 %v73, %v280
    %v282 = vpop.f32.mrf.mxu0
    %v283 = vadd.f32 %v69, %v282
    %v284 = vpop.f32.mrf.mxu0
    %v285 = vadd.f32 %v73, %v284
    %286 = vmatprep.mubr.bf16.mxu0 0
    %287 = vmatmul.mubr.bf16.gmra.mxu0 %v176
    %v288 = vpop.f32.mrf.mxu0
    %v289 = vadd.f32 %v69, %v288
    %v290 = vpop.f32.mrf.mxu0
    %v291 = vadd.f32 %v73, %v290
    %v292 = vpop.f32.mrf.mxu0
    %v293 = vadd.f32 %v69, %v292
    %v294 = vpop.f32.mrf.mxu0
    %v295 = vadd.f32 %v73, %v294
    %296 = vmatprep.mubr.bf16.mxu0 0
    %297 = vmatmul.mubr.bf16.gmra.mxu0 %v179
    %v298 = vpop.f32.mrf.mxu0
    %v299 = vadd.f32 %v69, %v298
    %v300 = vpop.f32.mrf.mxu0
    %v301 = vadd.f32 %v73, %v300
    %v302 = vpop.f32.mrf.mxu0
    %v303 = vadd.f32 %v69, %v302
    %v304 = vpop.f32.mrf.mxu0
    %v305 = vadd.f32 %v73, %v304
    %306 = vdwg.mxu0
    %307 = vmatprep.subr.bf16.mxu0 0
    %308 = vmatpush1.bf16.msra.mxu0 0
    %309 = vmatprep.subr.bf16.mxu0 0
    %310 = vmatpush1.bf16.msra.mxu0 0
    %311 = vmatprep.subr.bf16.mxu0 0
    %312 = vmatpush1.bf16.msra.mxu0 0
    %313 = vmatprep.subr.bf16.mxu0 0
    %314 = vmatpush1.bf16.msra.mxu0 0
    %315 = vmatprep.subr.bf16.mxu0 0
    %316 = vmatpush1.bf16.msra.mxu0 0
    %317 = vmatprep.subr.bf16.mxu0 0
    %318 = vmatpush1.bf16.msra.mxu0 0
    %319 = vmatprep.subr.bf16.mxu0 %v192
    %320 = vmatpush1.bf16.msra.mxu0 %v189
    %321 = vmatprep.subr.bf16.mxu0 %v147
    %322 = vmatpush1.bf16.msra.mxu0 %v146
    %323 = vmatprep.subr.bf16.mxu0 0
    %324 = vmatpush2.bf16.msra.mxu0 0
    %325 = vmatprep.subr.bf16.mxu0 0
    %326 = vmatpush2.bf16.msra.mxu0 0
    %327 = vmatprep.subr.bf16.mxu0 0
    %328 = vmatpush2.bf16.msra.mxu0 0
    %329 = vmatprep.subr.bf16.mxu0 0
    %330 = vmatpush2.bf16.msra.mxu0 0
    %331 = vmatprep.subr.bf16.mxu0 0
    %332 = vmatpush2.bf16.msra.mxu0 0
    %333 = vmatprep.subr.bf16.mxu0 0
    %334 = vmatpush2.bf16.msra.mxu0 0
    %335 = vmatprep.subr.bf16.mxu0 0
    %336 = vmatpush2.bf16.msra.mxu0 0
    %337 = vmatprep.subr.bf16.mxu0 0
    %338 = vmatpush2.bf16.msra.mxu0 0
    %339 = vmatprep.mubr.bf16.mxu0 0
    %340 = vmatmul.mubr.bf16.gmra.mxu0 %v158
    %v341 = vpop.f32.mrf.mxu0
    %v342 = vadd.f32 %v77, %v341
    %v343 = vpop.f32.mrf.mxu0
    %v344 = vadd.f32 %v81, %v343
    %v345 = vpop.f32.mrf.mxu0
    %v346 = vadd.f32 %v77, %v345
    %v347 = vpop.f32.mrf.mxu0
    %v348 = vadd.f32 %v81, %v347
    %349 = vmatprep.mubr.bf16.mxu0 0
    %350 = vmatmul.mubr.bf16.gmra.mxu0 %v161
    %v351 = vpop.f32.mrf.mxu0
    %v352 = vadd.f32 %v77, %v351
    %v353 = vpop.f32.mrf.mxu0
    %v354 = vadd.f32 %v81, %v353
    %v355 = vpop.f32.mrf.mxu0
    %v356 = vadd.f32 %v77, %v355
    %v357 = vpop.f32.mrf.mxu0
    %v358 = vadd.f32 %v81, %v357
    %359 = vmatprep.mubr.bf16.mxu0 0
    %360 = vmatmul.mubr.bf16.gmra.mxu0 %v164
    %v361 = vpop.f32.mrf.mxu0
    %v362 = vadd.f32 %v77, %v361
    %v363 = vpop.f32.mrf.mxu0
    %v364 = vadd.f32 %v81, %v363
    %v365 = vpop.f32.mrf.mxu0
    %v366 = vadd.f32 %v77, %v365
    %v367 = vpop.f32.mrf.mxu0
    %v368 = vadd.f32 %v81, %v367
    %369 = vmatprep.mubr.bf16.mxu0 0
    %370 = vmatmul.mubr.bf16.gmra.mxu0 %v167
    %v371 = vpop.f32.mrf.mxu0
    %v372 = vadd.f32 %v77, %v371
    %v373 = vpop.f32.mrf.mxu0
    %v374 = vadd.f32 %v81, %v373
    %v375 = vpop.f32.mrf.mxu0
    %v376 = vadd.f32 %v77, %v375
    %v377 = vpop.f32.mrf.mxu0
    %v378 = vadd.f32 %v81, %v377
    %379 = vmatprep.mubr.bf16.mxu0 0
    %380 = vmatmul.mubr.bf16.gmra.mxu0 %v170
    %v381 = vpop.f32.mrf.mxu0
    %v382 = vadd.f32 %v77, %v381
    %v383 = vpop.f32.mrf.mxu0
    %v384 = vadd.f32 %v81, %v383
    %v385 = vpop.f32.mrf.mxu0
    %v386 = vadd.f32 %v77, %v385
    %v387 = vpop.f32.mrf.mxu0
    %v388 = vadd.f32 %v81, %v387
    %389 = vmatprep.mubr.bf16.mxu0 0
    %390 = vmatmul.mubr.bf16.gmra.mxu0 %v173
    %v391 = vpop.f32.mrf.mxu0
    %v392 = vadd.f32 %v77, %v391
    %v393 = vpop.f32.mrf.mxu0
    %v394 = vadd.f32 %v81, %v393
    %v395 = vpop.f32.mrf.mxu0
    %v396 = vadd.f32 %v77, %v395
    %v397 = vpop.f32.mrf.mxu0
    %v398 = vadd.f32 %v81, %v397
    %399 = vmatprep.mubr.bf16.mxu0 0
    %400 = vmatmul.mubr.bf16.gmra.mxu0 %v176
    %v401 = vpop.f32.mrf.mxu0
    %v402 = vadd.f32 %v77, %v401
    %v403 = vpop.f32.mrf.mxu0
    %v404 = vadd.f32 %v81, %v403
    %v405 = vpop.f32.mrf.mxu0
    %v406 = vadd.f32 %v77, %v405
    %v407 = vpop.f32.mrf.mxu0
    %v408 = vadd.f32 %v81, %v407
    %409 = vmatprep.mubr.bf16.mxu0 0
    %410 = vmatmul.mubr.bf16.gmra.mxu0 %v179
    %v411 = vpop.f32.mrf.mxu0
    %v412 = vadd.f32 %v77, %v411
    %v413 = vpop.f32.mrf.mxu0
    %v414 = vadd.f32 %v81, %v413
    %v415 = vpop.f32.mrf.mxu0
    %v416 = vadd.f32 %v77, %v415
    %v417 = vpop.f32.mrf.mxu0
    %v418 = vadd.f32 %v81, %v417
    %419 = vdwg.mxu0
    %v420 = vmax.f32 %v229, 0.0
    %v421 = vmax.f32 %v231, 0.0
    %v422 = vmax.f32 %v342, 0.0
    %v423 = vmax.f32 %v344, 0.0
    %v424 = vmax.f32 %v233, 0.0
    %v425 = vmax.f32 %v235, 0.0
    %v426 = vmax.f32 %v346, 0.0
    %v427 = vmax.f32 %v348, 0.0
    %v428 = vmax.f32 %v239, 0.0
    %v429 = vmax.f32 %v241, 0.0
    %v430 = vmax.f32 %v352, 0.0
    %v431 = vmax.f32 %v354, 0.0
    %v432 = vmax.f32 %v243, 0.0
    %v433 = vmax.f32 %v245, 0.0
    %v434 = vmax.f32 %v356, 0.0
    %v435 = vmax.f32 %v358, 0.0
    %v436 = vmax.f32 %v249, 0.0
    %v437 = vmax.f32 %v251, 0.0
    %v438 = vmax.f32 %v362, 0.0
    %v439 = vmax.f32 %v364, 0.0
    %v440 = vmax.f32 %v253, 0.0
    %v441 = vmax.f32 %v255, 0.0
    %v442 = vmax.f32 %v366, 0.0
    %v443 = vmax.f32 %v368, 0.0
    %v444 = vmax.f32 %v259, 0.0
    %v445 = vmax.f32 %v261, 0.0
    %v446 = vmax.f32 %v372, 0.0
    %v447 = vmax.f32 %v374, 0.0
    %v448 = vmax.f32 %v263, 0.0
    %v449 = vmax.f32 %v265, 0.0
    %v450 = vmax.f32 %v376, 0.0
    %v451 = vmax.f32 %v378, 0.0
    %v452 = vmax.f32 %v269, 0.0
    %v453 = vmax.f32 %v271, 0.0
    %v454 = vmax.f32 %v382, 0.0
    %v455 = vmax.f32 %v384, 0.0
    %v456 = vmax.f32 %v273, 0.0
    %v457 = vmax.f32 %v275, 0.0
    %v458 = vmax.f32 %v386, 0.0
    %v459 = vmax.f32 %v388, 0.0
    %v460 = vmax.f32 %v279, 0.0
    %v461 = vmax.f32 %v281, 0.0
    %v462 = vmax.f32 %v392, 0.0
    %v463 = vmax.f32 %v394, 0.0
    %v464 = vmax.f32 %v283, 0.0
    %v465 = vmax.f32 %v285, 0.0
    %v466 = vmax.f32 %v396, 0.0
    %v467 = vmax.f32 %v398, 0.0
    %v468 = vmax.f32 %v289, 0.0
    %v469 = vmax.f32 %v291, 0.0
    %v470 = vmax.f32 %v402, 0.0
    %v471 = vmax.f32 %v404, 0.0
    %v472 = vmax.f32 %v293, 0.0
    %v473 = vmax.f32 %v295, 0.0
    %v474 = vmax.f32 %v406, 0.0
    %v475 = vmax.f32 %v408, 0.0
    %v476 = vmax.f32 %v299, 0.0
    %v477 = vmax.f32 %v301, 0.0
    %v478 = vmax.f32 %v412, 0.0
    %v479 = vmax.f32 %v414, 0.0
    %v480 = vmax.f32 %v303, 0.0
    %v481 = vmax.f32 %v305, 0.0
    %v482 = vmax.f32 %v416, 0.0
    %v483 = vmax.f32 %v418, 0.0
    %v484 = vpack.c.bf16 %v424, %v420
    %v485 = vpack.c.bf16 %v425, %v421
    %v486 = vpack.c.bf16 %v426, %v422
    %v487 = vpack.c.bf16 %v427, %v423
    %v488 = vpack.c.bf16 %v432, %v428
    %v489 = vpack.c.bf16 %v433, %v429
    %v490 = vpack.c.bf16 %v434, %v430
    %v491 = vpack.c.bf16 %v435, %v431
    %v492 = vpack.c.bf16 %v440, %v436
    %v493 = vpack.c.bf16 %v441, %v437
    %v494 = vpack.c.bf16 %v442, %v438
    %v495 = vpack.c.bf16 %v443, %v439
    %v496 = vpack.c.bf16 %v448, %v444
    %v497 = vpack.c.bf16 %v449, %v445
    %v498 = vpack.c.bf16 %v450, %v446
    %v499 = vpack.c.bf16 %v451, %v447
    %v500 = vpack.c.bf16 %v456, %v452
    %v501 = vpack.c.bf16 %v457, %v453
    %v502 = vpack.c.bf16 %v458, %v454
    %v503 = vpack.c.bf16 %v459, %v455
    %v504 = vpack.c.bf16 %v464, %v460
    %v505 = vpack.c.bf16 %v465, %v461
    %v506 = vpack.c.bf16 %v466, %v462
    %v507 = vpack.c.bf16 %v467, %v463
    %v508 = vpack.c.bf16 %v472, %v468
    %v509 = vpack.c.bf16 %v473, %v469
    %v510 = vpack.c.bf16 %v474, %v470
    %v511 = vpack.c.bf16 %v475, %v471
    %v512 = vpack.c.bf16 %v480, %v476
    %v513 = vpack.c.bf16 %v481, %v477
    %v514 = vpack.c.bf16 %v482, %v478
    %v515 = vpack.c.bf16 %v483, %v479
    %v516 = vld [vmem:[#allocation3] sm:$0xff]
    %v517 = vld [vmem:[#allocation3 + $0x8] sm:$0xf]
    %v518 = vld [vmem:[#allocation3 + $0xc] sm:$0xff]
    %v519 = vld [vmem:[#allocation3 + $0x14] sm:$0xf]
    %v520 = vld [vmem:[#allocation3 + $0x18] sm:$0xff]
    %v521 = vld [vmem:[#allocation3 + $0x20] sm:$0xf]
    %v522 = vld [vmem:[#allocation3 + $0x24] sm:$0xff]
    %v523 = vld [vmem:[#allocation3 + $0x2c] sm:$0xf]
    %v524 = vld [vmem:[#allocation3 + $0x30] sm:$0xff]
    %v525 = vld [vmem:[#allocation3 + $0x38] sm:$0xf]
    %v526 = vld [vmem:[#allocation3 + $0x3c] sm:$0xff]
    %v527 = vld [vmem:[#allocation3 + $0x44] sm:$0xf]
    %v528 = vld [vmem:[#allocation3 + $0x48] sm:$0xff]
    %v529 = vld [vmem:[#allocation3 + $0x50] sm:$0xf]
    %v530 = vld [vmem:[#allocation3 + $0x54] sm:$0xff]
    %v531 = vld [vmem:[#allocation3 + $0x5c] sm:$0xf]
    %v532 = vld [vmem:[#allocation3 + $0x60] sm:$0xff]
    %v533 = vld [vmem:[#allocation3 + $0x68] sm:$0xf]
    %v534 = vld [vmem:[#allocation3 + $0x6c] sm:$0xff]
    %v535 = vld [vmem:[#allocation3 + $0x74] sm:$0xf]
    %v536 = vld [vmem:[#allocation3 + $0x78] sm:$0xff]
    %v537 = vld [vmem:[#allocation3 + $0x80] sm:$0xf]
    %v538 = vld [vmem:[#allocation3 + $0x84] sm:$0xff]
    %v539 = vld [vmem:[#allocation3 + $0x8c] sm:$0xf]
    %v540 = vld [vmem:[#allocation3 + $0x90] sm:$0xff]
    %v541 = vld [vmem:[#allocation3 + $0x98] sm:$0xf]
    %v542 = vld [vmem:[#allocation3 + $0x9c] sm:$0xff]
    %v543 = vld [vmem:[#allocation3 + $0xa4] sm:$0xf]
    %v544 = vld [vmem:[#allocation3 + $0xa8] sm:$0xff]
    %v545 = vld [vmem:[#allocation3 + $0xb0] sm:$0xf]
    %v546 = vld [vmem:[#allocation3 + $0xb4] sm:$0xff]
    %v547 = vld [vmem:[#allocation3 + $0xbc] sm:$0xf]
    %v548 = vld [vmem:[#allocation3 + $0xc0] sm:$0xff]
    %v549 = vld [vmem:[#allocation3 + $0xc8] sm:$0xf]
    %v550 = vld [vmem:[#allocation3 + $0xcc] sm:$0xff]
    %v551 = vld [vmem:[#allocation3 + $0xd4] sm:$0xf]
    %v552 = vld [vmem:[#allocation3 + $0xd8] sm:$0xff]
    %v553 = vld [vmem:[#allocation3 + $0xe0] sm:$0xf]
    %v554 = vld [vmem:[#allocation3 + $0xe4] sm:$0xff]
    %v555 = vld [vmem:[#allocation3 + $0xec] sm:$0xf]
    %v556 = vld [vmem:[#allocation3 + $0xf0] sm:$0xff]
    %v557 = vld [vmem:[#allocation3 + $0xf8] sm:$0xf]
    %v558 = vld [vmem:[#allocation3 + $0xfc] sm:$0xff]
    %v559 = vld [vmem:[#allocation3 + $0x104] sm:$0xf]
    %v560 = vld [vmem:[#allocation3 + $0x108] sm:$0xff]
    %v561 = vld [vmem:[#allocation3 + $0x110] sm:$0xf]
    %v562 = vld [vmem:[#allocation3 + $0x114] sm:$0xff]
    %v563 = vld [vmem:[#allocation3 + $0x11c] sm:$0xf]
    %v564 = vld [vmem:[#allocation3 + $0x120] sm:$0xff]
    %v565 = vld [vmem:[#allocation3 + $0x128] sm:$0xf]
    %v566 = vld [vmem:[#allocation3 + $0x12c] sm:$0xff]
    %v567 = vld [vmem:[#allocation3 + $0x134] sm:$0xf]
    %v568 = vld [vmem:[#allocation3 + $0x138] sm:$0xff]
    %v569 = vld [vmem:[#allocation3 + $0x140] sm:$0xf]
    %v570 = vld [vmem:[#allocation3 + $0x144] sm:$0xff]
    %v571 = vld [vmem:[#allocation3 + $0x14c] sm:$0xf]
    %v572 = vld [vmem:[#allocation3 + $0x150] sm:$0xff]
    %v573 = vld [vmem:[#allocation3 + $0x158] sm:$0xf]
    %v574 = vld [vmem:[#allocation3 + $0x15c] sm:$0xff]
    %v575 = vld [vmem:[#allocation3 + $0x164] sm:$0xf]
    %v576 = vld [vmem:[#allocation3 + $0x168] sm:$0xff]
    %v577 = vld [vmem:[#allocation3 + $0x170] sm:$0xf]
    %v578 = vld [vmem:[#allocation3 + $0x174] sm:$0xff]
    %v579 = vld [vmem:[#allocation3 + $0x17c] sm:$0xf]
    %v580 = vld [vmem:[#allocation3 + $0x180] sm:$0xff]
    %v581 = vld [vmem:[#allocation3 + $0x188] sm:$0xf]
    %v582 = vld [vmem:[#allocation3 + $0x18c] sm:$0xff]
    %v583 = vld [vmem:[#allocation3 + $0x194] sm:$0xf]
    %v584 = vld [vmem:[#allocation3 + $0x198] sm:$0xff]
    %v585 = vld [vmem:[#allocation3 + $0x1a0] sm:$0xf]
    %v586 = vld [vmem:[#allocation3 + $0x1a4] sm:$0xff]
    %v587 = vld [vmem:[#allocation3 + $0x1ac] sm:$0xf]
    %v588 = vld [vmem:[#allocation3 + $0x1b0] sm:$0xff]
    %v589 = vld [vmem:[#allocation3 + $0x1b8] sm:$0xf]
    %v590 = vld [vmem:[#allocation3 + $0x1bc] sm:$0xff]
    %v591 = vld [vmem:[#allocation3 + $0x1c4] sm:$0xf]
    %v592 = vld [vmem:[#allocation3 + $0x1c8] sm:$0xff]
    %v593 = vld [vmem:[#allocation3 + $0x1d0] sm:$0xf]
    %v594 = vld [vmem:[#allocation3 + $0x1d4] sm:$0xff]
    %v595 = vld [vmem:[#allocation3 + $0x1dc] sm:$0xf]
    %v596 = vld [vmem:[#allocation3 + $0x1e0] sm:$0xff]
    %v597 = vld [vmem:[#allocation3 + $0x1e8] sm:$0xf]
    %v598 = vld [vmem:[#allocation3 + $0x1ec] sm:$0xff]
    %v599 = vld [vmem:[#allocation3 + $0x1f4] sm:$0xf]
    %v600 = vld [vmem:[#allocation3 + $0x1f8] sm:$0xff]
    %v601 = vld [vmem:[#allocation3 + $0x200] sm:$0xf]
    %v602 = vld [vmem:[#allocation3 + $0x204] sm:$0xff]
    %v603 = vld [vmem:[#allocation3 + $0x20c] sm:$0xf]
    %v604 = vld [vmem:[#allocation3 + $0x210] sm:$0xff]
    %v605 = vld [vmem:[#allocation3 + $0x218] sm:$0xf]
    %v606 = vld [vmem:[#allocation3 + $0x21c] sm:$0xff]
    %v607 = vld [vmem:[#allocation3 + $0x224] sm:$0xf]
    %v608 = vld [vmem:[#allocation3 + $0x228] sm:$0xff]
    %v609 = vld [vmem:[#allocation3 + $0x230] sm:$0xf]
    %v610 = vld [vmem:[#allocation3 + $0x234] sm:$0xff]
    %v611 = vld [vmem:[#allocation3 + $0x23c] sm:$0xf]
    %v612 = vld [vmem:[#allocation3 + $0x240] sm:$0xff]
    %v613 = vld [vmem:[#allocation3 + $0x248] sm:$0xf]
    %v614 = vld [vmem:[#allocation3 + $0x24c] sm:$0xff]
    %v615 = vld [vmem:[#allocation3 + $0x254] sm:$0xf]
    %v616 = vld [vmem:[#allocation3 + $0x258] sm:$0xff]
    %v617 = vld [vmem:[#allocation3 + $0x260] sm:$0xf]
    %v618 = vld [vmem:[#allocation3 + $0x264] sm:$0xff]
    %v619 = vld [vmem:[#allocation3 + $0x26c] sm:$0xf]
    %v620 = vld [vmem:[#allocation3 + $0x270] sm:$0xff]
    %v621 = vld [vmem:[#allocation3 + $0x278] sm:$0xf]
    %v622 = vld [vmem:[#allocation3 + $0x27c] sm:$0xff]
    %v623 = vld [vmem:[#allocation3 + $0x284] sm:$0xf]
    %v624 = vld [vmem:[#allocation3 + $0x288] sm:$0xff]
    %v625 = vld [vmem:[#allocation3 + $0x290] sm:$0xf]
    %v626 = vld [vmem:[#allocation3 + $0x294] sm:$0xff]
    %v627 = vld [vmem:[#allocation3 + $0x29c] sm:$0xf]
    %v628 = vld [vmem:[#allocation3 + $0x2a0] sm:$0xff]
    %v629 = vld [vmem:[#allocation3 + $0x2a8] sm:$0xf]
    %v630 = vld [vmem:[#allocation3 + $0x2ac] sm:$0xff]
    %v631 = vld [vmem:[#allocation3 + $0x2b4] sm:$0xf]
    %v632 = vld [vmem:[#allocation3 + $0x2b8] sm:$0xff]
    %v633 = vld [vmem:[#allocation3 + $0x2c0] sm:$0xf]
    %v634 = vld [vmem:[#allocation3 + $0x2c4] sm:$0xff]
    %v635 = vld [vmem:[#allocation3 + $0x2cc] sm:$0xf]
    %v636 = vld [vmem:[#allocation3 + $0x2d0] sm:$0xff]
    %v637 = vld [vmem:[#allocation3 + $0x2d8] sm:$0xf]
    %v638 = vld [vmem:[#allocation3 + $0x2dc] sm:$0xff]
    %v639 = vld [vmem:[#allocation3 + $0x2e4] sm:$0xf]
    %v640 = vld [vmem:[#allocation3 + $0x2e8] sm:$0xff]
    %v641 = vld [vmem:[#allocation3 + $0x2f0] sm:$0xf]
    %v642 = vld [vmem:[#allocation3 + $0x2f4] sm:$0xff]
    %v643 = vld [vmem:[#allocation3 + $0x2fc] sm:$0xf]
    %v644 = vld [vmem:[%s4] sm:$0x7]
    %v646 = vlaneseq
    %v647 = vshrl.u32 %v646, 7
    %v648 = vsub.s32 0, %v647
    %v649 = vrot.slane %v644, %v648
    %v650 = vlaneseq
    %v651 = vshrl.u32 %v650, 7
    %v652 = vsub.s32 1, %v651
    %v653 = vrot.slane %v644, %v652
    %v654 = vlaneseq
    %v655 = vshrl.u32 %v654, 7
    %v656 = vsub.s32 2, %v655
    %v657 = vrot.slane %v644, %v656
    %v789 = vunpack.c.l.b16 %v516
    %v790 = vunpack.c.h.b16 %v516
    %v791 = vunpack.c.l.b16 %v517
    %v792 = vunpack.c.l.b16 %v518
    %v793 = vunpack.c.h.b16 %v518
    %v794 = vunpack.c.l.b16 %v519
    %v795 = vunpack.c.l.b16 %v520
    %v796 = vunpack.c.h.b16 %v520
    %v797 = vunpack.c.l.b16 %v521
    %v798 = vunpack.c.l.b16 %v522
    %v799 = vunpack.c.h.b16 %v522
    %v800 = vunpack.c.l.b16 %v523
    %v801 = vunpack.c.l.b16 %v524
    %v802 = vunpack.c.h.b16 %v524
    %v803 = vunpack.c.l.b16 %v525
    %v804 = vunpack.c.l.b16 %v526
    %v805 = vunpack.c.h.b16 %v526
    %v806 = vunpack.c.l.b16 %v527
    %v807 = vunpack.c.l.b16 %v528
    %v808 = vunpack.c.h.b16 %v528
    %v809 = vunpack.c.l.b16 %v529
    %v810 = vunpack.c.l.b16 %v530
    %v811 = vunpack.c.h.b16 %v530
    %v812 = vunpack.c.l.b16 %v531
    %v813 = vunpack.c.l.b16 %v532
    %v814 = vunpack.c.h.b16 %v532
    %v815 = vunpack.c.l.b16 %v533
    %v816 = vunpack.c.l.b16 %v534
    %v817 = vunpack.c.h.b16 %v534
    %v818 = vunpack.c.l.b16 %v535
    %v819 = vunpack.c.l.b16 %v536
    %v820 = vunpack.c.h.b16 %v536
    %v821 = vunpack.c.l.b16 %v537
    %v822 = vunpack.c.l.b16 %v538
    %v823 = vunpack.c.h.b16 %v538
    %v824 = vunpack.c.l.b16 %v539
    %v825 = vunpack.c.l.b16 %v540
    %v826 = vunpack.c.h.b16 %v540
    %v827 = vunpack.c.l.b16 %v541
    %v828 = vunpack.c.l.b16 %v542
    %v829 = vunpack.c.h.b16 %v542
    %v830 = vunpack.c.l.b16 %v543
    %v831 = vunpack.c.l.b16 %v544
    %v832 = vunpack.c.h.b16 %v544
    %v833 = vunpack.c.l.b16 %v545
    %v834 = vunpack.c.l.b16 %v546
    %v835 = vunpack.c.h.b16 %v546
    %v836 = vunpack.c.l.b16 %v547
    %v837 = vunpack.c.l.b16 %v548
    %v838 = vunpack.c.h.b16 %v548
    %v839 = vunpack.c.l.b16 %v549
    %v840 = vunpack.c.l.b16 %v550
    %v841 = vunpack.c.h.b16 %v550
    %v842 = vunpack.c.l.b16 %v551
    %v843 = vunpack.c.l.b16 %v552
    %v844 = vunpack.c.h.b16 %v552
    %v845 = vunpack.c.l.b16 %v553
    %v846 = vunpack.c.l.b16 %v554
    %v847 = vunpack.c.h.b16 %v554
    %v848 = vunpack.c.l.b16 %v555
    %v849 = vunpack.c.l.b16 %v556
    %v850 = vunpack.c.h.b16 %v556
    %v851 = vunpack.c.l.b16 %v557
    %v852 = vunpack.c.l.b16 %v558
    %v853 = vunpack.c.h.b16 %v558
    %v854 = vunpack.c.l.b16 %v559
    %v855 = vunpack.c.l.b16 %v560
    %v856 = vunpack.c.h.b16 %v560
    %v857 = vunpack.c.l.b16 %v561
    %v858 = vunpack.c.l.b16 %v562
    %v859 = vunpack.c.h.b16 %v562
    %v860 = vunpack.c.l.b16 %v563
    %v861 = vunpack.c.l.b16 %v564
    %v862 = vunpack.c.h.b16 %v564
    %v863 = vunpack.c.l.b16 %v565
    %v864 = vunpack.c.l.b16 %v566
    %v865 = vunpack.c.h.b16 %v566
    %v866 = vunpack.c.l.b16 %v567
    %v867 = vunpack.c.l.b16 %v568
    %v868 = vunpack.c.h.b16 %v568
    %v869 = vunpack.c.l.b16 %v569
    %v870 = vunpack.c.l.b16 %v570
    %v871 = vunpack.c.h.b16 %v570
    %v872 = vunpack.c.l.b16 %v571
    %v873 = vunpack.c.l.b16 %v572
    %v874 = vunpack.c.h.b16 %v572
    %v875 = vunpack.c.l.b16 %v573
    %v876 = vunpack.c.l.b16 %v574
    %v877 = vunpack.c.h.b16 %v574
    %v878 = vunpack.c.l.b16 %v575
    %v879 = vunpack.c.l.b16 %v576
    %v880 = vunpack.c.h.b16 %v576
    %v881 = vunpack.c.l.b16 %v577
    %v882 = vunpack.c.l.b16 %v578
    %v883 = vunpack.c.h.b16 %v578
    %v884 = vunpack.c.l.b16 %v579
    %v885 = vunpack.c.l.b16 %v580
    %v886 = vunpack.c.h.b16 %v580
    %v887 = vunpack.c.l.b16 %v581
    %v888 = vunpack.c.l.b16 %v582
    %v889 = vunpack.c.h.b16 %v582
    %v890 = vunpack.c.l.b16 %v583
    %v891 = vunpack.c.l.b16 %v584
    %v892 = vunpack.c.h.b16 %v584
    %v893 = vunpack.c.l.b16 %v585
    %v894 = vunpack.c.l.b16 %v586
    %v895 = vunpack.c.h.b16 %v586
    %v896 = vunpack.c.l.b16 %v587
    %v897 = vunpack.c.l.b16 %v588
    %v898 = vunpack.c.h.b16 %v588
    %v899 = vunpack.c.l.b16 %v589
    %v900 = vunpack.c.l.b16 %v590
    %v901 = vunpack.c.h.b16 %v590
    %v902 = vunpack.c.l.b16 %v591
    %v903 = vunpack.c.l.b16 %v592
    %v904 = vunpack.c.h.b16 %v592
    %v905 = vunpack.c.l.b16 %v593
    %v906 = vunpack.c.l.b16 %v594
    %v907 = vunpack.c.h.b16 %v594
    %v908 = vunpack.c.l.b16 %v595
    %v909 = vunpack.c.l.b16 %v596
    %v910 = vunpack.c.h.b16 %v596
    %v911 = vunpack.c.l.b16 %v597
    %v912 = vunpack.c.l.b16 %v598
    %v913 = vunpack.c.h.b16 %v598
    %v914 = vunpack.c.l.b16 %v599
    %v915 = vunpack.c.l.b16 %v600
    %v916 = vunpack.c.h.b16 %v600
    %v917 = vunpack.c.l.b16 %v601
    %v918 = vunpack.c.l.b16 %v602
    %v919 = vunpack.c.h.b16 %v602
    %v920 = vunpack.c.l.b16 %v603
    %v921 = vunpack.c.l.b16 %v604
    %v922 = vunpack.c.h.b16 %v604
    %v923 = vunpack.c.l.b16 %v605
    %v924 = vunpack.c.l.b16 %v606
    %v925 = vunpack.c.h.b16 %v606
    %v926 = vunpack.c.l.b16 %v607
    %v927 = vunpack.c.l.b16 %v608
    %v928 = vunpack.c.h.b16 %v608
    %v929 = vunpack.c.l.b16 %v609
    %v930 = vunpack.c.l.b16 %v610
    %v931 = vunpack.c.h.b16 %v610
    %v932 = vunpack.c.l.b16 %v611
    %v933 = vunpack.c.l.b16 %v612
    %v934 = vunpack.c.h.b16 %v612
    %v935 = vunpack.c.l.b16 %v613
    %v936 = vunpack.c.l.b16 %v614
    %v937 = vunpack.c.h.b16 %v614
    %v938 = vunpack.c.l.b16 %v615
    %v939 = vunpack.c.l.b16 %v616
    %v940 = vunpack.c.h.b16 %v616
    %v941 = vunpack.c.l.b16 %v617
    %v942 = vunpack.c.l.b16 %v618
    %v943 = vunpack.c.h.b16 %v618
    %v944 = vunpack.c.l.b16 %v619
    %v945 = vunpack.c.l.b16 %v620
    %v946 = vunpack.c.h.b16 %v620
    %v947 = vunpack.c.l.b16 %v621
    %v948 = vunpack.c.l.b16 %v622
    %v949 = vunpack.c.h.b16 %v622
    %v950 = vunpack.c.l.b16 %v623
    %v951 = vunpack.c.l.b16 %v624
    %v952 = vunpack.c.h.b16 %v624
    %v953 = vunpack.c.l.b16 %v625
    %v954 = vunpack.c.l.b16 %v626
    %v955 = vunpack.c.h.b16 %v626
    %v956 = vunpack.c.l.b16 %v627
    %v957 = vunpack.c.l.b16 %v628
    %v958 = vunpack.c.h.b16 %v628
    %v959 = vunpack.c.l.b16 %v629
    %v960 = vunpack.c.l.b16 %v630
    %v961 = vunpack.c.h.b16 %v630
    %v962 = vunpack.c.l.b16 %v631
    %v963 = vunpack.c.l.b16 %v632
    %v964 = vunpack.c.h.b16 %v632
    %v965 = vunpack.c.l.b16 %v633
    %v966 = vunpack.c.l.b16 %v634
    %v967 = vunpack.c.h.b16 %v634
    %v968 = vunpack.c.l.b16 %v635
    %v969 = vunpack.c.l.b16 %v636
    %v970 = vunpack.c.h.b16 %v636
    %v971 = vunpack.c.l.b16 %v637
    %v972 = vunpack.c.l.b16 %v638
    %v973 = vunpack.c.h.b16 %v638
    %v974 = vunpack.c.l.b16 %v639
    %v975 = vunpack.c.l.b16 %v640
    %v976 = vunpack.c.h.b16 %v640
    %v977 = vunpack.c.l.b16 %v641
    %v978 = vunpack.c.l.b16 %v642
    %v979 = vunpack.c.h.b16 %v642
    %v980 = vunpack.c.l.b16 %v643
    %v981 = vpack.c.b16 %v792, %v789
    %v982 = vpack.c.b16 %v793, %v790
    %v983 = vpack.c.b16 %v794, %v791
    %v984 = vpack.c.b16 %v798, %v795
    %v985 = vpack.c.b16 %v799, %v796
    %v986 = vpack.c.b16 %v800, %v797
    %v987 = vpack.c.b16 %v804, %v801
    %v988 = vpack.c.b16 %v805, %v802
    %v989 = vpack.c.b16 %v806, %v803
    %v990 = vpack.c.b16 %v810, %v807
    %v991 = vpack.c.b16 %v811, %v808
    %v992 = vpack.c.b16 %v812, %v809
    %v993 = vpack.c.b16 %v816, %v813
    %v994 = vpack.c.b16 %v817, %v814
    %v995 = vpack.c.b16 %v818, %v815
    %v996 = vpack.c.b16 %v822, %v819
    %v997 = vpack.c.b16 %v823, %v820
    %v998 = vpack.c.b16 %v824, %v821
    %v999 = vpack.c.b16 %v828, %v825
    %v1000 = vpack.c.b16 %v829, %v826
    %v1001 = vpack.c.b16 %v830, %v827
    %v1002 = vpack.c.b16 %v834, %v831
    %v1003 = vpack.c.b16 %v835, %v832
    %v1004 = vpack.c.b16 %v836, %v833
    %v1005 = vpack.c.b16 %v840, %v837
    %v1006 = vpack.c.b16 %v841, %v838
    %v1007 = vpack.c.b16 %v842, %v839
    %v1008 = vpack.c.b16 %v846, %v843
    %v1009 = vpack.c.b16 %v847, %v844
    %v1010 = vpack.c.b16 %v848, %v845
    %v1011 = vpack.c.b16 %v852, %v849
    %v1012 = vpack.c.b16 %v853, %v850
    %v1013 = vpack.c.b16 %v854, %v851
    %v1014 = vpack.c.b16 %v858, %v855
    %v1015 = vpack.c.b16 %v859, %v856
    %v1016 = vpack.c.b16 %v860, %v857
    %v1017 = vpack.c.b16 %v864, %v861
    %v1018 = vpack.c.b16 %v865, %v862
    %v1019 = vpack.c.b16 %v866, %v863
    %v1020 = vpack.c.b16 %v870, %v867
    %v1021 = vpack.c.b16 %v871, %v868
    %v1022 = vpack.c.b16 %v872, %v869
    %v1023 = vpack.c.b16 %v876, %v873
    %v1024 = vpack.c.b16 %v877, %v874
    %v1025 = vpack.c.b16 %v878, %v875
    %v1026 = vpack.c.b16 %v882, %v879
    %v1027 = vpack.c.b16 %v883, %v880
    %v1028 = vpack.c.b16 %v884, %v881
    %v1029 = vpack.c.b16 %v888, %v885
    %v1030 = vpack.c.b16 %v889, %v886
    %v1031 = vpack.c.b16 %v890, %v887
    %v1032 = vpack.c.b16 %v894, %v891
    %v1033 = vpack.c.b16 %v895, %v892
    %v1034 = vpack.c.b16 %v896, %v893
    %v1035 = vpack.c.b16 %v900, %v897
    %v1036 = vpack.c.b16 %v901, %v898
    %v1037 = vpack.c.b16 %v902, %v899
    %v1038 = vpack.c.b16 %v906, %v903
    %v1039 = vpack.c.b16 %v907, %v904
    %v1040 = vpack.c.b16 %v908, %v905
    %v1041 = vpack.c.b16 %v912, %v909
    %v1042 = vpack.c.b16 %v913, %v910
    %v1043 = vpack.c.b16 %v914, %v911
    %v1044 = vpack.c.b16 %v918, %v915
    %v1045 = vpack.c.b16 %v919, %v916
    %v1046 = vpack.c.b16 %v920, %v917
    %v1047 = vpack.c.b16 %v924, %v921
    %v1048 = vpack.c.b16 %v925, %v922
    %v1049 = vpack.c.b16 %v926, %v923
    %v1050 = vpack.c.b16 %v930, %v927
    %v1051 = vpack.c.b16 %v931, %v928
    %v1052 = vpack.c.b16 %v932, %v929
    %v1053 = vpack.c.b16 %v936, %v933
    %v1054 = vpack.c.b16 %v937, %v934
    %v1055 = vpack.c.b16 %v938, %v935
    %v1056 = vpack.c.b16 %v942, %v939
    %v1057 = vpack.c.b16 %v943, %v940
    %v1058 = vpack.c.b16 %v944, %v941
    %v1059 = vpack.c.b16 %v948, %v945
    %v1060 = vpack.c.b16 %v949, %v946
    %v1061 = vpack.c.b16 %v950, %v947
    %v1062 = vpack.c.b16 %v954, %v951
    %v1063 = vpack.c.b16 %v955, %v952
    %v1064 = vpack.c.b16 %v956, %v953
    %v1065 = vpack.c.b16 %v960, %v957
    %v1066 = vpack.c.b16 %v961, %v958
    %v1067 = vpack.c.b16 %v962, %v959
    %v1068 = vpack.c.b16 %v966, %v963
    %v1069 = vpack.c.b16 %v967, %v964
    %v1070 = vpack.c.b16 %v968, %v965
    %v1071 = vpack.c.b16 %v972, %v969
    %v1072 = vpack.c.b16 %v973, %v970
    %v1073 = vpack.c.b16 %v974, %v971
    %v1074 = vpack.c.b16 %v978, %v975
    %v1075 = vpack.c.b16 %v979, %v976
    %v1076 = vpack.c.b16 %v980, %v977
    %1173 = vmatprep.subr.bf16.mxu0 %v1003
    %1174 = vmatpush1.bf16.msra.mxu0 %v1002
    %1175 = vmatprep.subr.bf16.mxu0 %v1000
    %1176 = vmatpush1.bf16.msra.mxu0 %v999
    %1177 = vmatprep.subr.bf16.mxu0 %v997
    %1178 = vmatpush1.bf16.msra.mxu0 %v996
    %1179 = vmatprep.subr.bf16.mxu0 %v994
    %1180 = vmatpush1.bf16.msra.mxu0 %v993
    %1181 = vmatprep.subr.bf16.mxu0 %v991
    %1182 = vmatpush1.bf16.msra.mxu0 %v990
    %1183 = vmatprep.subr.bf16.mxu0 %v988
    %1184 = vmatpush1.bf16.msra.mxu0 %v987
    %1185 = vmatprep.subr.bf16.mxu0 %v985
    %1186 = vmatpush1.bf16.msra.mxu0 %v984
    %1187 = vmatprep.subr.bf16.mxu0 %v982
    %1188 = vmatpush1.bf16.msra.mxu0 %v981
    %1189 = vmatprep.subr.bf16.mxu0 %v1027
    %1190 = vmatpush2.bf16.msra.mxu0 %v1026
    %1191 = vmatprep.subr.bf16.mxu0 %v1024
    %1192 = vmatpush2.bf16.msra.mxu0 %v1023
    %1193 = vmatprep.subr.bf16.mxu0 %v1021
    %1194 = vmatpush2.bf16.msra.mxu0 %v1020
    %1195 = vmatprep.subr.bf16.mxu0 %v1018
    %1196 = vmatpush2.bf16.msra.mxu0 %v1017
    %1197 = vmatprep.subr.bf16.mxu0 %v1015
    %1198 = vmatpush2.bf16.msra.mxu0 %v1014
    %1199 = vmatprep.subr.bf16.mxu0 %v1012
    %1200 = vmatpush2.bf16.msra.mxu0 %v1011
    %1201 = vmatprep.subr.bf16.mxu0 %v1009
    %1202 = vmatpush2.bf16.msra.mxu0 %v1008
    %1203 = vmatprep.subr.bf16.mxu0 %v1006
    %1204 = vmatpush2.bf16.msra.mxu0 %v1005
    %1205 = vmatprep.mubr.bf16.mxu0 %v485
    %1206 = vmatmul.mubr.bf16.gmra.mxu0 %v484
    %v1207 = vpop.f32.mrf.mxu0
    %v1208 = vadd.f32 %v649, %v1207
    %v1209 = vpop.f32.mrf.mxu0
    %v1210 = vadd.f32 %v653, %v1209
    %v1211 = vpop.f32.mrf.mxu0
    %v1212 = vadd.f32 %v649, %v1211
    %v1213 = vpop.f32.mrf.mxu0
    %v1214 = vadd.f32 %v653, %v1213
    %1215 = vmatprep.mubr.bf16.mxu0 %v489
    %1216 = vmatmul.mubr.bf16.gmra.mxu0 %v488
    %v1217 = vpop.f32.mrf.mxu0
    %v1218 = vadd.f32 %v649, %v1217
    %v1219 = vpop.f32.mrf.mxu0
    %v1220 = vadd.f32 %v653, %v1219
    %v1221 = vpop.f32.mrf.mxu0
    %v1222 = vadd.f32 %v649, %v1221
    %v1223 = vpop.f32.mrf.mxu0
    %v1224 = vadd.f32 %v653, %v1223
    %1225 = vmatprep.mubr.bf16.mxu0 %v493
    %1226 = vmatmul.mubr.bf16.gmra.mxu0 %v492
    %v1227 = vpop.f32.mrf.mxu0
    %v1228 = vadd.f32 %v649, %v1227
    %v1229 = vpop.f32.mrf.mxu0
    %v1230 = vadd.f32 %v653, %v1229
    %v1231 = vpop.f32.mrf.mxu0
    %v1232 = vadd.f32 %v649, %v1231
    %v1233 = vpop.f32.mrf.mxu0
    %v1234 = vadd.f32 %v653, %v1233
    %1235 = vmatprep.mubr.bf16.mxu0 %v497
    %1236 = vmatmul.mubr.bf16.gmra.mxu0 %v496
    %v1237 = vpop.f32.mrf.mxu0
    %v1238 = vadd.f32 %v649, %v1237
    %v1239 = vpop.f32.mrf.mxu0
    %v1240 = vadd.f32 %v653, %v1239
    %v1241 = vpop.f32.mrf.mxu0
    %v1242 = vadd.f32 %v649, %v1241
    %v1243 = vpop.f32.mrf.mxu0
    %v1244 = vadd.f32 %v653, %v1243
    %1245 = vmatprep.mubr.bf16.mxu0 %v501
    %1246 = vmatmul.mubr.bf16.gmra.mxu0 %v500
    %v1247 = vpop.f32.mrf.mxu0
    %v1248 = vadd.f32 %v649, %v1247
    %v1249 = vpop.f32.mrf.mxu0
    %v1250 = vadd.f32 %v653, %v1249
    %v1251 = vpop.f32.mrf.mxu0
    %v1252 = vadd.f32 %v649, %v1251
    %v1253 = vpop.f32.mrf.mxu0
    %v1254 = vadd.f32 %v653, %v1253
    %1255 = vmatprep.mubr.bf16.mxu0 %v505
    %1256 = vmatmul.mubr.bf16.gmra.mxu0 %v504
    %v1257 = vpop.f32.mrf.mxu0
    %v1258 = vadd.f32 %v649, %v1257
    %v1259 = vpop.f32.mrf.mxu0
    %v1260 = vadd.f32 %v653, %v1259
    %v1261 = vpop.f32.mrf.mxu0
    %v1262 = vadd.f32 %v649, %v1261
    %v1263 = vpop.f32.mrf.mxu0
    %v1264 = vadd.f32 %v653, %v1263
    %1265 = vmatprep.mubr.bf16.mxu0 %v509
    %1266 = vmatmul.mubr.bf16.gmra.mxu0 %v508
    %v1267 = vpop.f32.mrf.mxu0
    %v1268 = vadd.f32 %v649, %v1267
    %v1269 = vpop.f32.mrf.mxu0
    %v1270 = vadd.f32 %v653, %v1269
    %v1271 = vpop.f32.mrf.mxu0
    %v1272 = vadd.f32 %v649, %v1271
    %v1273 = vpop.f32.mrf.mxu0
    %v1274 = vadd.f32 %v653, %v1273
    %1275 = vmatprep.mubr.bf16.mxu0 %v513
    %1276 = vmatmul.mubr.bf16.gmra.mxu0 %v512
    %v1277 = vpop.f32.mrf.mxu0
    %v1278 = vadd.f32 %v649, %v1277
    %v1279 = vpop.f32.mrf.mxu0
    %v1280 = vadd.f32 %v653, %v1279
    %v1281 = vpop.f32.mrf.mxu0
    %v1282 = vadd.f32 %v649, %v1281
    %v1283 = vpop.f32.mrf.mxu0
    %v1284 = vadd.f32 %v653, %v1283
    %1285 = vdwg.mxu0
    %1286 = vmatprep.subr.bf16.mxu0 %v1051
    %1287 = vmatpush1.bf16.msra.mxu0 %v1050
    %1288 = vmatprep.subr.bf16.mxu0 %v1048
    %1289 = vmatpush1.bf16.msra.mxu0 %v1047
    %1290 = vmatprep.subr.bf16.mxu0 %v1045
    %1291 = vmatpush1.bf16.msra.mxu0 %v1044
    %1292 = vmatprep.subr.bf16.mxu0 %v1042
    %1293 = vmatpush1.bf16.msra.mxu0 %v1041
    %1294 = vmatprep.subr.bf16.mxu0 %v1039
    %1295 = vmatpush1.bf16.msra.mxu0 %v1038
    %1296 = vmatprep.subr.bf16.mxu0 %v1036
    %1297 = vmatpush1.bf16.msra.mxu0 %v1035
    %1298 = vmatprep.subr.bf16.mxu0 %v1033
    %1299 = vmatpush1.bf16.msra.mxu0 %v1032
    %1300 = vmatprep.subr.bf16.mxu0 %v1030
    %1301 = vmatpush1.bf16.msra.mxu0 %v1029
    %1302 = vmatprep.subr.bf16.mxu0 %v1075
    %1303 = vmatpush2.bf16.msra.mxu0 %v1074
    %1304 = vmatprep.subr.bf16.mxu0 %v1072
    %1305 = vmatpush2.bf16.msra.mxu0 %v1071
    %1306 = vmatprep.subr.bf16.mxu0 %v1069
    %1307 = vmatpush2.bf16.msra.mxu0 %v1068
    %1308 = vmatprep.subr.bf16.mxu0 %v1066
    %1309 = vmatpush2.bf16.msra.mxu0 %v1065
    %1310 = vmatprep.subr.bf16.mxu0 %v1063
    %1311 = vmatpush2.bf16.msra.mxu0 %v1062
    %1312 = vmatprep.subr.bf16.mxu0 %v1060
    %1313 = vmatpush2.bf16.msra.mxu0 %v1059
    %1314 = vmatprep.subr.bf16.mxu0 %v1057
    %1315 = vmatpush2.bf16.msra.mxu0 %v1056
    %1316 = vmatprep.subr.bf16.mxu0 %v1054
    %1317 = vmatpush2.bf16.msra.mxu0 %v1053
    %1318 = vmatprep.mubr.bf16.mxu0 %v487
    %1319 = vmatmul.mubr.bf16.gmra.mxu0 %v486
    %v1320 = vpop.f32.mrf.mxu0
    %v1321 = vadd.f32 %v1208, %v1320
    %v1322 = vpop.f32.mrf.mxu0
    %v1323 = vadd.f32 %v1210, %v1322
    %v1324 = vpop.f32.mrf.mxu0
    %v1325 = vadd.f32 %v1212, %v1324
    %v1326 = vpop.f32.mrf.mxu0
    %v1327 = vadd.f32 %v1214, %v1326
    %1328 = vmatprep.mubr.bf16.mxu0 %v491
    %1329 = vmatmul.mubr.bf16.gmra.mxu0 %v490
    %v1330 = vpop.f32.mrf.mxu0
    %v1331 = vadd.f32 %v1218, %v1330
    %v1332 = vpop.f32.mrf.mxu0
    %v1333 = vadd.f32 %v1220, %v1332
    %v1334 = vpop.f32.mrf.mxu0
    %v1335 = vadd.f32 %v1222, %v1334
    %v1336 = vpop.f32.mrf.mxu0
    %v1337 = vadd.f32 %v1224, %v1336
    %1338 = vmatprep.mubr.bf16.mxu0 %v495
    %1339 = vmatmul.mubr.bf16.gmra.mxu0 %v494
    %v1340 = vpop.f32.mrf.mxu0
    %v1341 = vadd.f32 %v1228, %v1340
    %v1342 = vpop.f32.mrf.mxu0
    %v1343 = vadd.f32 %v1230, %v1342
    %v1344 = vpop.f32.mrf.mxu0
    %v1345 = vadd.f32 %v1232, %v1344
    %v1346 = vpop.f32.mrf.mxu0
    %v1347 = vadd.f32 %v1234, %v1346
    %1348 = vmatprep.mubr.bf16.mxu0 %v499
    %1349 = vmatmul.mubr.bf16.gmra.mxu0 %v498
    %v1350 = vpop.f32.mrf.mxu0
    %v1351 = vadd.f32 %v1238, %v1350
    %v1352 = vpop.f32.mrf.mxu0
    %v1353 = vadd.f32 %v1240, %v1352
    %v1354 = vpop.f32.mrf.mxu0
    %v1355 = vadd.f32 %v1242, %v1354
    %v1356 = vpop.f32.mrf.mxu0
    %v1357 = vadd.f32 %v1244, %v1356
    %1358 = vmatprep.mubr.bf16.mxu0 %v503
    %1359 = vmatmul.mubr.bf16.gmra.mxu0 %v502
    %v1360 = vpop.f32.mrf.mxu0
    %v1361 = vadd.f32 %v1248, %v1360
    %v1362 = vpop.f32.mrf.mxu0
    %v1363 = vadd.f32 %v1250, %v1362
    %v1364 = vpop.f32.mrf.mxu0
    %v1365 = vadd.f32 %v1252, %v1364
    %v1366 = vpop.f32.mrf.mxu0
    %v1367 = vadd.f32 %v1254, %v1366
    %1368 = vmatprep.mubr.bf16.mxu0 %v507
    %1369 = vmatmul.mubr.bf16.gmra.mxu0 %v506
    %v1370 = vpop.f32.mrf.mxu0
    %v1371 = vadd.f32 %v1258, %v1370
    %v1372 = vpop.f32.mrf.mxu0
    %v1373 = vadd.f32 %v1260, %v1372
    %v1374 = vpop.f32.mrf.mxu0
    %v1375 = vadd.f32 %v1262, %v1374
    %v1376 = vpop.f32.mrf.mxu0
    %v1377 = vadd.f32 %v1264, %v1376
    %1378 = vmatprep.mubr.bf16.mxu0 %v511
    %1379 = vmatmul.mubr.bf16.gmra.mxu0 %v510
    %v1380 = vpop.f32.mrf.mxu0
    %v1381 = vadd.f32 %v1268, %v1380
    %v1382 = vpop.f32.mrf.mxu0
    %v1383 = vadd.f32 %v1270, %v1382
    %v1384 = vpop.f32.mrf.mxu0
    %v1385 = vadd.f32 %v1272, %v1384
    %v1386 = vpop.f32.mrf.mxu0
    %v1387 = vadd.f32 %v1274, %v1386
    %1388 = vmatprep.mubr.bf16.mxu0 %v515
    %1389 = vmatmul.mubr.bf16.gmra.mxu0 %v514
    %v1390 = vpop.f32.mrf.mxu0
    %v1391 = vadd.f32 %v1278, %v1390
    %v1392 = vpop.f32.mrf.mxu0
    %v1393 = vadd.f32 %v1280, %v1392
    %v1394 = vpop.f32.mrf.mxu0
    %v1395 = vadd.f32 %v1282, %v1394
    %v1396 = vpop.f32.mrf.mxu0
    %v1397 = vadd.f32 %v1284, %v1396
    %1398 = vdwg.mxu0
    %1399 = vmatprep.subr.bf16.mxu0 0
    %1400 = vmatpush1.bf16.msra.mxu0 %v1004
    %1401 = vmatprep.subr.bf16.mxu0 0
    %1402 = vmatpush1.bf16.msra.mxu0 %v1001
    %1403 = vmatprep.subr.bf16.mxu0 0
    %1404 = vmatpush1.bf16.msra.mxu0 %v998
    %1405 = vmatprep.subr.bf16.mxu0 0
    %1406 = vmatpush1.bf16.msra.mxu0 %v995
    %1407 = vmatprep.subr.bf16.mxu0 0
    %1408 = vmatpush1.bf16.msra.mxu0 %v992
    %1409 = vmatprep.subr.bf16.mxu0 0
    %1410 = vmatpush1.bf16.msra.mxu0 %v989
    %1411 = vmatprep.subr.bf16.mxu0 0
    %1412 = vmatpush1.bf16.msra.mxu0 %v986
    %1413 = vmatprep.subr.bf16.mxu0 0
    %1414 = vmatpush1.bf16.msra.mxu0 %v983
    %1415 = vmatprep.subr.bf16.mxu0 0
    %1416 = vmatpush2.bf16.msra.mxu0 %v1028
    %1417 = vmatprep.subr.bf16.mxu0 0
    %1418 = vmatpush2.bf16.msra.mxu0 %v1025
    %1419 = vmatprep.subr.bf16.mxu0 0
    %1420 = vmatpush2.bf16.msra.mxu0 %v1022
    %1421 = vmatprep.subr.bf16.mxu0 0
    %1422 = vmatpush2.bf16.msra.mxu0 %v1019
    %1423 = vmatprep.subr.bf16.mxu0 0
    %1424 = vmatpush2.bf16.msra.mxu0 %v1016
    %1425 = vmatprep.subr.bf16.mxu0 0
    %1426 = vmatpush2.bf16.msra.mxu0 %v1013
    %1427 = vmatprep.subr.bf16.mxu0 0
    %1428 = vmatpush2.bf16.msra.mxu0 %v1010
    %1429 = vmatprep.subr.bf16.mxu0 0
    %1430 = vmatpush2.bf16.msra.mxu0 %v1007
    %1431 = vmatprep.mubr.bf16.mxu0 %v485
    %1432 = vmatmul.mubr.bf16.gmra.mxu0 %v484
    %v1433 = vpop.f32.mrf.mxu0
    %v1434 = vadd.f32 %v657, %v1433
    %v1435 = vpop.f32.mrf.mxu0
    %v1436 = vpop.f32.mrf.mxu0
    %v1437 = vadd.f32 %v657, %v1436
    %v1438 = vpop.f32.mrf.mxu0
    %1439 = vmatprep.mubr.bf16.mxu0 %v489
    %1440 = vmatmul.mubr.bf16.gmra.mxu0 %v488
    %v1441 = vpop.f32.mrf.mxu0
    %v1442 = vadd.f32 %v657, %v1441
    %v1443 = vpop.f32.mrf.mxu0
    %v1444 = vpop.f32.mrf.mxu0
    %v1445 = vadd.f32 %v657, %v1444
    %v1446 = vpop.f32.mrf.mxu0
    %1447 = vmatprep.mubr.bf16.mxu0 %v493
    %1448 = vmatmul.mubr.bf16.gmra.mxu0 %v492
    %v1449 = vpop.f32.mrf.mxu0
    %v1450 = vadd.f32 %v657, %v1449
    %v1451 = vpop.f32.mrf.mxu0
    %v1452 = vpop.f32.mrf.mxu0
    %v1453 = vadd.f32 %v657, %v1452
    %v1454 = vpop.f32.mrf.mxu0
    %1455 = vmatprep.mubr.bf16.mxu0 %v497
    %1456 = vmatmul.mubr.bf16.gmra.mxu0 %v496
    %v1457 = vpop.f32.mrf.mxu0
    %v1458 = vadd.f32 %v657, %v1457
    %v1459 = vpop.f32.mrf.mxu0
    %v1460 = vpop.f32.mrf.mxu0
    %v1461 = vadd.f32 %v657, %v1460
    %v1462 = vpop.f32.mrf.mxu0
    %1463 = vmatprep.mubr.bf16.mxu0 %v501
    %1464 = vmatmul.mubr.bf16.gmra.mxu0 %v500
    %v1465 = vpop.f32.mrf.mxu0
    %v1466 = vadd.f32 %v657, %v1465
    %v1467 = vpop.f32.mrf.mxu0
    %v1468 = vpop.f32.mrf.mxu0
    %v1469 = vadd.f32 %v657, %v1468
    %v1470 = vpop.f32.mrf.mxu0
    %1471 = vmatprep.mubr.bf16.mxu0 %v505
    %1472 = vmatmul.mubr.bf16.gmra.mxu0 %v504
    %v1473 = vpop.f32.mrf.mxu0
    %v1474 = vadd.f32 %v657, %v1473
    %v1475 = vpop.f32.mrf.mxu0
    %v1476 = vpop.f32.mrf.mxu0
    %v1477 = vadd.f32 %v657, %v1476
    %v1478 = vpop.f32.mrf.mxu0
    %1479 = vmatprep.mubr.bf16.mxu0 %v509
    %1480 = vmatmul.mubr.bf16.gmra.mxu0 %v508
    %v1481 = vpop.f32.mrf.mxu0
    %v1482 = vadd.f32 %v657, %v1481
    %v1483 = vpop.f32.mrf.mxu0
    %v1484 = vpop.f32.mrf.mxu0
    %v1485 = vadd.f32 %v657, %v1484
    %v1486 = vpop.f32.mrf.mxu0
    %1487 = vmatprep.mubr.bf16.mxu0 %v513
    %1488 = vmatmul.mubr.bf16.gmra.mxu0 %v512
    %v1489 = vpop.f32.mrf.mxu0
    %v1490 = vadd.f32 %v657, %v1489
    %v1491 = vpop.f32.mrf.mxu0
    %v1492 = vpop.f32.mrf.mxu0
    %v1493 = vadd.f32 %v657, %v1492
    %v1494 = vpop.f32.mrf.mxu0
    %1495 = vdwg.mxu0
    %1496 = vmatprep.subr.bf16.mxu0 0
    %1497 = vmatpush1.bf16.msra.mxu0 %v1052
    %1498 = vmatprep.subr.bf16.mxu0 0
    %1499 = vmatpush1.bf16.msra.mxu0 %v1049
    %1500 = vmatprep.subr.bf16.mxu0 0
    %1501 = vmatpush1.bf16.msra.mxu0 %v1046
    %1502 = vmatprep.subr.bf16.mxu0 0
    %1503 = vmatpush1.bf16.msra.mxu0 %v1043
    %1504 = vmatprep.subr.bf16.mxu0 0
    %1505 = vmatpush1.bf16.msra.mxu0 %v1040
    %1506 = vmatprep.subr.bf16.mxu0 0
    %1507 = vmatpush1.bf16.msra.mxu0 %v1037
    %1508 = vmatprep.subr.bf16.mxu0 0
    %1509 = vmatpush1.bf16.msra.mxu0 %v1034
    %1510 = vmatprep.subr.bf16.mxu0 0
    %1511 = vmatpush1.bf16.msra.mxu0 %v1031
    %1512 = vmatprep.subr.bf16.mxu0 0
    %1513 = vmatpush2.bf16.msra.mxu0 %v1076
    %1514 = vmatprep.subr.bf16.mxu0 0
    %1515 = vmatpush2.bf16.msra.mxu0 %v1073
    %1516 = vmatprep.subr.bf16.mxu0 0
    %1517 = vmatpush2.bf16.msra.mxu0 %v1070
    %1518 = vmatprep.subr.bf16.mxu0 0
    %1519 = vmatpush2.bf16.msra.mxu0 %v1067
    %1520 = vmatprep.subr.bf16.mxu0 0
    %1521 = vmatpush2.bf16.msra.mxu0 %v1064
    %1522 = vmatprep.subr.bf16.mxu0 0
    %1523 = vmatpush2.bf16.msra.mxu0 %v1061
    %1524 = vmatprep.subr.bf16.mxu0 0
    %1525 = vmatpush2.bf16.msra.mxu0 %v1058
    %1526 = vmatprep.subr.bf16.mxu0 0
    %1527 = vmatpush2.bf16.msra.mxu0 %v1055
    %1528 = vmatprep.mubr.bf16.mxu0 %v487
    %1529 = vmatmul.mubr.bf16.gmra.mxu0 %v486
    %v1530 = vpop.f32.mrf.mxu0
    %v1531 = vadd.f32 %v1434, %v1530
    %v1532 = vpop.f32.mrf.mxu0
    %v1533 = vpop.f32.mrf.mxu0
    %v1534 = vadd.f32 %v1437, %v1533
    %v1535 = vpop.f32.mrf.mxu0
    %1536 = vmatprep.mubr.bf16.mxu0 %v491
    %1537 = vmatmul.mubr.bf16.gmra.mxu0 %v490
    %v1538 = vpop.f32.mrf.mxu0
    %v1539 = vadd.f32 %v1442, %v1538
    %v1540 = vpop.f32.mrf.mxu0
    %v1541 = vpop.f32.mrf.mxu0
    %v1542 = vadd.f32 %v1445, %v1541
    %v1543 = vpop.f32.mrf.mxu0
    %1544 = vmatprep.mubr.bf16.mxu0 %v495
    %1545 = vmatmul.mubr.bf16.gmra.mxu0 %v494
    %v1546 = vpop.f32.mrf.mxu0
    %v1547 = vadd.f32 %v1450, %v1546
    %v1548 = vpop.f32.mrf.mxu0
    %v1549 = vpop.f32.mrf.mxu0
    %v1550 = vadd.f32 %v1453, %v1549
    %v1551 = vpop.f32.mrf.mxu0
    %1552 = vmatprep.mubr.bf16.mxu0 %v499
    %1553 = vmatmul.mubr.bf16.gmra.mxu0 %v498
    %v1554 = vpop.f32.mrf.mxu0
    %v1555 = vadd.f32 %v1458, %v1554
    %v1556 = vpop.f32.mrf.mxu0
    %v1557 = vpop.f32.mrf.mxu0
    %v1558 = vadd.f32 %v1461, %v1557
    %v1559 = vpop.f32.mrf.mxu0
    %1560 = vmatprep.mubr.bf16.mxu0 %v503
    %1561 = vmatmul.mubr.bf16.gmra.mxu0 %v502
    %v1562 = vpop.f32.mrf.mxu0
    %v1563 = vadd.f32 %v1466, %v1562
    %v1564 = vpop.f32.mrf.mxu0
    %v1565 = vpop.f32.mrf.mxu0
    %v1566 = vadd.f32 %v1469, %v1565
    %v1567 = vpop.f32.mrf.mxu0
    %1568 = vmatprep.mubr.bf16.mxu0 %v507
    %1569 = vmatmul.mubr.bf16.gmra.mxu0 %v506
    %v1570 = vpop.f32.mrf.mxu0
    %v1571 = vadd.f32 %v1474, %v1570
    %v1572 = vpop.f32.mrf.mxu0
    %v1573 = vpop.f32.mrf.mxu0
    %v1574 = vadd.f32 %v1477, %v1573
    %v1575 = vpop.f32.mrf.mxu0
    %1576 = vmatprep.mubr.bf16.mxu0 %v511
    %1577 = vmatmul.mubr.bf16.gmra.mxu0 %v510
    %v1578 = vpop.f32.mrf.mxu0
    %v1579 = vadd.f32 %v1482, %v1578
    %v1580 = vpop.f32.mrf.mxu0
    %v1581 = vpop.f32.mrf.mxu0
    %v1582 = vadd.f32 %v1485, %v1581
    %v1583 = vpop.f32.mrf.mxu0
    %1584 = vmatprep.mubr.bf16.mxu0 %v515
    %1585 = vmatmul.mubr.bf16.gmra.mxu0 %v514
    %v1586 = vpop.f32.mrf.mxu0
    %v1587 = vadd.f32 %v1490, %v1586
    %v1588 = vpop.f32.mrf.mxu0
    %v1589 = vpop.f32.mrf.mxu0
    %v1590 = vadd.f32 %v1493, %v1589
    %v1591 = vpop.f32.mrf.mxu0
    %1592 = vdwg.mxu0
    %v1593 = vmax.f32 %v1321, 0.0
    %v1594 = vmax.f32 %v1323, 0.0
    %v1595 = vmax.f32 %v1531, 0.0
    %v1596 = vmax.f32 %v1325, 0.0
    %v1597 = vmax.f32 %v1327, 0.0
    %v1598 = vmax.f32 %v1534, 0.0
    %v1599 = vmax.f32 %v1331, 0.0
    %v1600 = vmax.f32 %v1333, 0.0
    %v1601 = vmax.f32 %v1539, 0.0
    %v1602 = vmax.f32 %v1335, 0.0
    %v1603 = vmax.f32 %v1337, 0.0
    %v1604 = vmax.f32 %v1542, 0.0
    %v1605 = vmax.f32 %v1341, 0.0
    %v1606 = vmax.f32 %v1343, 0.0
    %v1607 = vmax.f32 %v1547, 0.0
    %v1608 = vmax.f32 %v1345, 0.0
    %v1609 = vmax.f32 %v1347, 0.0
    %v1610 = vmax.f32 %v1550, 0.0
    %v1611 = vmax.f32 %v1351, 0.0
    %v1612 = vmax.f32 %v1353, 0.0
    %v1613 = vmax.f32 %v1555, 0.0
    %v1614 = vmax.f32 %v1355, 0.0
    %v1615 = vmax.f32 %v1357, 0.0
    %v1616 = vmax.f32 %v1558, 0.0
    %v1617 = vmax.f32 %v1361, 0.0
    %v1618 = vmax.f32 %v1363, 0.0
    %v1619 = vmax.f32 %v1563, 0.0
    %v1620 = vmax.f32 %v1365, 0.0
    %v1621 = vmax.f32 %v1367, 0.0
    %v1622 = vmax.f32 %v1566, 0.0
    %v1623 = vmax.f32 %v1371, 0.0
    %v1624 = vmax.f32 %v1373, 0.0
    %v1625 = vmax.f32 %v1571, 0.0
    %v1626 = vmax.f32 %v1375, 0.0
    %v1627 = vmax.f32 %v1377, 0.0
    %v1628 = vmax.f32 %v1574, 0.0
    %v1629 = vmax.f32 %v1381, 0.0
    %v1630 = vmax.f32 %v1383, 0.0
    %v1631 = vmax.f32 %v1579, 0.0
    %v1632 = vmax.f32 %v1385, 0.0
    %v1633 = vmax.f32 %v1387, 0.0
    %v1634 = vmax.f32 %v1582, 0.0
    %v1635 = vmax.f32 %v1391, 0.0
    %v1636 = vmax.f32 %v1393, 0.0
    %v1637 = vmax.f32 %v1587, 0.0
    %v1638 = vmax.f32 %v1395, 0.0
    %v1639 = vmax.f32 %v1397, 0.0
    %v1640 = vmax.f32 %v1590, 0.0
    %v1641 = vld [vmem:[%s5] sm:$0x7]
    %v1643 = vlaneseq
    %v1644 = vshrl.u32 %v1643, 7
    %v1645 = vsub.s32 0, %v1644
    %v1646 = vrot.slane %v1641, %v1645
    %v1647 = vlaneseq
    %v1648 = vshrl.u32 %v1647, 7
    %v1649 = vsub.s32 1, %v1648
    %v1650 = vrot.slane %v1641, %v1649
    %v1651 = vlaneseq
    %v1652 = vshrl.u32 %v1651, 7
    %v1653 = vsub.s32 2, %v1652
    %v1654 = vrot.slane %v1641, %v1653
    %v1658 = vmul.f32 %v1593, %v1646
    %v1659 = vmul.f32 %v1594, %v1650
    %v1660 = vmul.f32 %v1595, %v1654
    %v1661 = vmul.f32 %v1596, %v1646
    %v1662 = vmul.f32 %v1597, %v1650
    %v1663 = vmul.f32 %v1598, %v1654
    %v1664 = vmul.f32 %v1599, %v1646
    %v1665 = vmul.f32 %v1600, %v1650
    %v1666 = vmul.f32 %v1601, %v1654
    %v1667 = vmul.f32 %v1602, %v1646
    %v1668 = vmul.f32 %v1603, %v1650
    %v1669 = vmul.f32 %v1604, %v1654
    %v1670 = vmul.f32 %v1605, %v1646
    %v1671 = vmul.f32 %v1606, %v1650
    %v1672 = vmul.f32 %v1607, %v1654
    %v1673 = vmul.f32 %v1608, %v1646
    %v1674 = vmul.f32 %v1609, %v1650
    %v1675 = vmul.f32 %v1610, %v1654
    %v1676 = vmul.f32 %v1611, %v1646
    %v1677 = vmul.f32 %v1612, %v1650
    %v1678 = vmul.f32 %v1613, %v1654
    %v1679 = vmul.f32 %v1614, %v1646
    %v1680 = vmul.f32 %v1615, %v1650
    %v1681 = vmul.f32 %v1616, %v1654
    %v1682 = vmul.f32 %v1617, %v1646
    %v1683 = vmul.f32 %v1618, %v1650
    %v1684 = vmul.f32 %v1619, %v1654
    %v1685 = vmul.f32 %v1620, %v1646
    %v1686 = vmul.f32 %v1621, %v1650
    %v1687 = vmul.f32 %v1622, %v1654
    %v1688 = vmul.f32 %v1623, %v1646
    %v1689 = vmul.f32 %v1624, %v1650
    %v1690 = vmul.f32 %v1625, %v1654
    %v1691 = vmul.f32 %v1626, %v1646
    %v1692 = vmul.f32 %v1627, %v1650
    %v1693 = vmul.f32 %v1628, %v1654
    %v1694 = vmul.f32 %v1629, %v1646
    %v1695 = vmul.f32 %v1630, %v1650
    %v1696 = vmul.f32 %v1631, %v1654
    %v1697 = vmul.f32 %v1632, %v1646
    %v1698 = vmul.f32 %v1633, %v1650
    %v1699 = vmul.f32 %v1634, %v1654
    %v1700 = vmul.f32 %v1635, %v1646
    %v1701 = vmul.f32 %v1636, %v1650
    %v1702 = vmul.f32 %v1637, %v1654
    %v1703 = vmul.f32 %v1638, %v1646
    %v1704 = vmul.f32 %v1639, %v1650
    %v1705 = vmul.f32 %v1640, %v1654
    %v1706 = vadd.f32 %v1658, %v1659
    %v1707 = vadd.f32 %v1706, %v1660
    %1708 = vadd.xlane.f32.xlu0 %v1707
    %v1709 = vpop.xlane.xlu0 %1708
    %v1710 = vadd.f32 %v1661, %v1662
    %v1711 = vadd.f32 %v1710, %v1663
    %1712 = vadd.xlane.f32.xlu0 %v1711
    %v1713 = vpop.xlane.xlu0 %1712
    %v1714 = vadd.f32 %v1664, %v1665
    %v1715 = vadd.f32 %v1714, %v1666
    %1716 = vadd.xlane.f32.xlu0 %v1715
    %v1717 = vpop.xlane.xlu0 %1716
    %v1718 = vadd.f32 %v1667, %v1668
    %v1719 = vadd.f32 %v1718, %v1669
    %1720 = vadd.xlane.f32.xlu0 %v1719
    %v1721 = vpop.xlane.xlu0 %1720
    %v1722 = vadd.f32 %v1670, %v1671
    %v1723 = vadd.f32 %v1722, %v1672
    %1724 = vadd.xlane.f32.xlu0 %v1723
    %v1725 = vpop.xlane.xlu0 %1724
    %v1726 = vadd.f32 %v1673, %v1674
    %v1727 = vadd.f32 %v1726, %v1675
    %1728 = vadd.xlane.f32.xlu0 %v1727
    %v1729 = vpop.xlane.xlu0 %1728
    %v1730 = vadd.f32 %v1676, %v1677
    %v1731 = vadd.f32 %v1730, %v1678
    %1732 = vadd.xlane.f32.xlu0 %v1731
    %v1733 = vpop.xlane.xlu0 %1732
    %v1734 = vadd.f32 %v1679, %v1680
    %v1735 = vadd.f32 %v1734, %v1681
    %1736 = vadd.xlane.f32.xlu0 %v1735
    %v1737 = vpop.xlane.xlu0 %1736
    %v1738 = vadd.f32 %v1682, %v1683
    %v1739 = vadd.f32 %v1738, %v1684
    %1740 = vadd.xlane.f32.xlu0 %v1739
    %v1741 = vpop.xlane.xlu0 %1740
    %v1742 = vadd.f32 %v1685, %v1686
    %v1743 = vadd.f32 %v1742, %v1687
    %1744 = vadd.xlane.f32.xlu0 %v1743
    %v1745 = vpop.xlane.xlu0 %1744
    %v1746 = vadd.f32 %v1688, %v1689
    %v1747 = vadd.f32 %v1746, %v1690
    %1748 = vadd.xlane.f32.xlu0 %v1747
    %v1749 = vpop.xlane.xlu0 %1748
    %v1750 = vadd.f32 %v1691, %v1692
    %v1751 = vadd.f32 %v1750, %v1693
    %1752 = vadd.xlane.f32.xlu0 %v1751
    %v1753 = vpop.xlane.xlu0 %1752
    %v1754 = vadd.f32 %v1694, %v1695
    %v1755 = vadd.f32 %v1754, %v1696
    %1756 = vadd.xlane.f32.xlu0 %v1755
    %v1757 = vpop.xlane.xlu0 %1756
    %v1758 = vadd.f32 %v1697, %v1698
    %v1759 = vadd.f32 %v1758, %v1699
    %1760 = vadd.xlane.f32.xlu0 %v1759
    %v1761 = vpop.xlane.xlu0 %1760
    %v1762 = vadd.f32 %v1700, %v1701
    %v1763 = vadd.f32 %v1762, %v1702
    %1764 = vadd.xlane.f32.xlu0 %v1763
    %v1765 = vpop.xlane.xlu0 %1764
    %v1766 = vadd.f32 %v1703, %v1704
    %v1767 = vadd.f32 %v1766, %v1705
    %1768 = vadd.xlane.f32.xlu0 %v1767
    %v1769 = vpop.xlane.xlu0 %1768
    %s1770 = sld [smem:[#allocation2]]
    %v1771 = vstv %s1770
    %v1772 = vadd.f32 %v1709, %v1771
    %v1773 = vadd.f32 %v1713, %v1771
    %v1774 = vadd.f32 %v1717, %v1771
    %v1775 = vadd.f32 %v1721, %v1771
    %v1776 = vadd.f32 %v1725, %v1771
    %v1777 = vadd.f32 %v1729, %v1771
    %v1778 = vadd.f32 %v1733, %v1771
    %v1779 = vadd.f32 %v1737, %v1771
    %v1780 = vadd.f32 %v1741, %v1771
    %v1781 = vadd.f32 %v1745, %v1771
    %v1782 = vadd.f32 %v1749, %v1771
    %v1783 = vadd.f32 %v1753, %v1771
    %v1784 = vadd.f32 %v1757, %v1771
    %v1785 = vadd.f32 %v1761, %v1771
    %v1786 = vadd.f32 %v1765, %v1771
    %v1787 = vadd.f32 %v1769, %v1771
    %vm1788 = vcmask 7168
    %1789 = vst.msk [vmem:[%s7] sm:$0xff] %vm1788, %v1772
    %1790 = vst.msk [vmem:[%s7 + $0x8] sm:$0xff] %vm1788, %v1773
    %1791 = vst.msk [vmem:[%s7 + $0x10] sm:$0xff] %vm1788, %v1774
    %1792 = vst.msk [vmem:[%s7 + $0x18] sm:$0xff] %vm1788, %v1775
    %1793 = vst.msk [vmem:[%s7 + $0x20] sm:$0xff] %vm1788, %v1776
    %1794 = vst.msk [vmem:[%s7 + $0x28] sm:$0xff] %vm1788, %v1777
    %1795 = vst.msk [vmem:[%s7 + $0x30] sm:$0xff] %vm1788, %v1778
    %1796 = vst.msk [vmem:[%s7 + $0x38] sm:$0xff] %vm1788, %v1779
    %1797 = vst.msk [vmem:[%s7 + $0x40] sm:$0xff] %vm1788, %v1780
    %1798 = vst.msk [vmem:[%s7 + $0x48] sm:$0xff] %vm1788, %v1781
    %1799 = vst.msk [vmem:[%s7 + $0x50] sm:$0xff] %vm1788, %v1782
    %1800 = vst.msk [vmem:[%s7 + $0x58] sm:$0xff] %vm1788, %v1783
    %1801 = vst.msk [vmem:[%s7 + $0x60] sm:$0xff] %vm1788, %v1784
    %1802 = vst.msk [vmem:[%s7 + $0x68] sm:$0xff] %vm1788, %v1785
    %1803 = vst.msk [vmem:[%s7 + $0x70] sm:$0xff] %vm1788, %v1786
    %1804 = vst.msk [vmem:[%s7 + $0x78] sm:$0xff] %vm1788, %v1787
    // Predicated region
    $region34: #{critic_forward.1} parent=1 // pred_check
      _
    $region35: #{critic_forward.1} parent=1 // pred_check_branch
      %1806 = sbr.rel (0) target = $region37
    $region36: #{critic_forward.1} parent=1 // pred_region
      _
    $region37: #{critic_forward.1} parent=1 // pred_fallthru
      _
    // Predicated region
    $region38: #{critic_forward.1} parent=1 // pred_check
      _
    $region39: #{critic_forward.1} parent=1 // pred_check_branch
      %1808 = sbr.rel (0) target = $region41
    $region40: #{critic_forward.1} parent=1 // pred_region
      _
    $region41: #{critic_forward.1} parent=1 // pred_fallthru
      _
    %1809 = vsyncpa [#allocation4], 1

</llo_original>
